<compile_context>
chip_gen: v7x
topology: tpu7x:2x2x1
jax: 0.10.0
libtpu: 0.0.40
codegen_flags: <defaults>
</compile_context>

<pallas_src>
import functools

import numpy as np
import jax
import jax.numpy as jnp
from jax.experimental import pallas as pl
from jax.experimental.pallas import tpu as pltpu


def _sampler_pcs_kernel(
    alphas_ref,                       # SMEM (6,) f32 : PReLU slopes (scalar prefetch)
    x_ref,                            # [TB, state_dim + map_feat] bf16 (streamed)
    we1, we2, we3,                    # encoder weights (bf16, resident)
    wm1s, wm1h, wm2, wm3, wm4, wm5,   # mlp weights    (bf16, resident)
    b_ref,                            # packed biases (8, BW), epilogue dtype (resident)
    out_ref,                          # [TB, out_pad]
    *, state_dim, bias_widths, bf16_epilogue,
):
    f32 = jnp.float32
    bf16 = jnp.bfloat16
    ew = bf16 if bf16_epilogue else f32   # elementwise (epilogue) dtype

    # Read the six scalar slopes from SMEM once, before any MXU work.
    a = [alphas_ref[i].astype(ew) for i in range(6)]

    def bias(i):
        # static row / lane slice of the packed bias operand -> (1, width)
        return b_ref[i:i + 1, :bias_widths[i]]

    def layer(x_bf16, w_ref, bi, alpha=None):
        acc = jnp.dot(x_bf16, w_ref[...], preferred_element_type=f32)
        y = acc.astype(ew) + bias(bi)
        if alpha is not None:
            y = jnp.where(y > 0, y, alpha * y)
        return y

    # Streamed input is already bf16; static lane slices split s / pcs.
    s = x_ref[:, :state_dim]
    pcs = x_ref[:, state_dim:]

    # ---- encoder: Linear -> PReLU -> Linear -> PReLU -> Linear ----
    h = layer(pcs, we1, 0, a[0])
    h = layer(h.astype(bf16), we2, 1, a[1])
    h = layer(h.astype(bf16), we3, 2, None)

    # ---- mlp on concat(s, h): split-weight first linear, shared f32 acc ----
    z = (jnp.dot(s, wm1s[...], preferred_element_type=f32)
         + jnp.dot(h.astype(bf16), wm1h[...], preferred_element_type=f32))
    z = z.astype(ew) + bias(3)
    z = jnp.where(z > 0, z, a[2] * z)          # Dropout -> identity (eval)
    z = layer(z.astype(bf16), wm2, 4, a[3])    # Dropout -> identity (eval)
    z = layer(z.astype(bf16), wm3, 5, a[4])    # Dropout -> identity (eval)
    z = layer(z.astype(bf16), wm4, 6, a[5])
    # final linear zero-padded to a lane-dense (128) width -> unmasked stores
    z = layer(z.astype(bf16), wm5, 7, None)

    out_ref[...] = z.astype(out_ref.dtype)


def init_params(key, state_dim, map_feature_size, hidden_feature_size, action_dim):
    """Deterministic synthetic parameters (weights as (in, out), biases (1, out))."""
    dims_enc = [(map_feature_size, 256), (256, 128), (128, hidden_feature_size)]
    dims_mlp = [(state_dim + hidden_feature_size, 512), (512, 256),
                (256, 128), (128, 64), (64, action_dim)]
    params = {}
    keys = jax.random.split(key, 2 * (len(dims_enc) + len(dims_mlp)))
    ki = 0
    for name, dims in (("enc", dims_enc), ("mlp", dims_mlp)):
        for i, (din, dout) in enumerate(dims):
            w = (jax.random.normal(keys[ki], (din, dout), jnp.float32)
                 * (1.0 / np.sqrt(din)))
            ki += 1
            b = jax.random.normal(keys[ki], (1, dout), jnp.float32) * 0.01
            ki += 1
            params[f"{name}_w{i}"] = w
            params[f"{name}_b{i}"] = b
    # PReLU default init in PyTorch: single slope 0.25 per PReLU (6 total)
    params["alphas"] = jnp.full((6,), 0.25, jnp.float32)
    return params


def sampler_pcs_forward(s, pcs, params, state_dim, hidden_feature_size,
                        action_dim, *, tile_batch=1024, bf16_epilogue=None,
                        out_dtype=jnp.float32, core_parallel=False):
    """Forward pass.  (Operand prep below would normally be done once, not per call.)

    bf16_epilogue=None auto-selects: f32 epilogue on v5 (no bf16 VPU),
    bf16 epilogue otherwise.  core_parallel=True requests explicit 2-TC
    sharding of the batch grid axis (v7x).  out_dtype=bf16 halves output
    writeback bytes (useful on v5e); the wrapper always returns f32.
    """
    f32, bf16 = jnp.float32, jnp.bfloat16

    if bf16_epilogue is None:
        bf16_epilogue = "v5" not in jax.devices()[0].device_kind.lower()
    ew = bf16 if bf16_epilogue else f32

    batch = s.shape[0]
    s_flat = s.reshape(batch, -1).astype(f32)
    pcs = pcs.astype(f32)
    map_feat = pcs.shape[1]
    in_feat = state_dim + map_feat

    # ---- single streamed bf16 operand: concat(s_flat, pcs) ----
    x = jnp.concatenate([s_flat, pcs], axis=1).astype(bf16)

    # ---- batch tiling: minimise pad waste, multiple of 16 (bf16 sublanes) ----
    n_tiles = max(1, -(-batch // int(tile_batch)))
    tb = -(-batch // n_tiles)            # even coverage of the batch
    tb = max(16, -(-tb // 16) * 16)      # bf16 sublane packing
    n_tiles = -(-batch // tb)
    b_pad = n_tiles * tb
    if b_pad != batch:
        x = jnp.pad(x, ((0, b_pad - batch), (0, 0)))

    # ---- weights: (in, out) layout, cast once to bf16 (f32 MXU accumulation) ----
    we1 = params["enc_w0"].astype(bf16)
    we2 = params["enc_w1"].astype(bf16)
    we3 = params["enc_w2"].astype(bf16)
    wm1 = params["mlp_w0"]
    wm1s = wm1[:state_dim, :].astype(bf16)     # split for concat(s, hidden)
    wm1h = wm1[state_dim:, :].astype(bf16)
    wm2 = params["mlp_w1"].astype(bf16)
    wm3 = params["mlp_w2"].astype(bf16)
    wm4 = params["mlp_w3"].astype(bf16)

    # final weight zero-padded to a lane-dense output width (unmasked stores)
    out_pad = max(128, -(-action_dim // 128) * 128)
    wm5 = (jnp.zeros((params["mlp_w4"].shape[0], out_pad), f32)
           .at[:, :action_dim].set(params["mlp_w4"]).astype(bf16))

    # ---- pack the 8 biases into one (8, BW) operand in the epilogue dtype ----
    biases = [params["enc_b0"], params["enc_b1"], params["enc_b2"],
              params["mlp_b0"], params["mlp_b1"], params["mlp_b2"],
              params["mlp_b3"], params["mlp_b4"]]
    bias_widths = [int(b.shape[-1]) for b in biases]
    bias_widths[-1] = out_pad                  # padded final bias row (zeros past action_dim)
    bw = -(-max(bias_widths) // 128) * 128
    b_packed = jnp.zeros((8, bw), f32)
    for i, b in enumerate(biases):
        b_packed = b_packed.at[i, :b.shape[-1]].set(b.reshape(-1))
    b_packed = b_packed.astype(ew)

    kernel = functools.partial(_sampler_pcs_kernel,
                               state_dim=state_dim,
                               bias_widths=tuple(bias_widths),
                               bf16_epilogue=bf16_epilogue)

    tiled = lambda i, *_: (i, 0)        # activation / output tiles stream over batch
    resident = lambda i, *_: (0, 0)     # weights & biases stay resident in VMEM

    operands = (params["alphas"],       # scalar prefetch -> SMEM
                x,
                we1, we2, we3, wm1s, wm1h, wm2, wm3, wm4, wm5, b_packed)

    in_specs = [
        pl.BlockSpec((tb, in_feat), tiled),
    ] + [pl.BlockSpec(w.shape, resident)
         for w in (we1, we2, we3, wm1s, wm1h, wm2, wm3, wm4, wm5, b_packed)]

    batch_sem = pltpu.CORE_PARALLEL if core_parallel else "parallel"
    vmem_limit = 48 * 1024 * 1024 if tb >= 512 else None

    out_padded = pl.pallas_call(
        kernel,
        out_shape=jax.ShapeDtypeStruct((b_pad, out_pad), out_dtype),
        grid_spec=pltpu.PrefetchScalarGridSpec(
            num_scalar_prefetch=1,
            grid=(n_tiles,),
            in_specs=in_specs,
            out_specs=pl.BlockSpec((tb, out_pad), tiled),
        ),
        compiler_params=pltpu.CompilerParams(
            dimension_semantics=(batch_sem,),
            vmem_limit_bytes=vmem_limit),
    )(*operands)

    return out_padded[:batch, :action_dim].astype(jnp.float32), None


def _reference_forward(s, pcs, params, state_dim, *, bf16_epilogue):
    """Pure-JAX reference matching the kernel's bf16-weight / f32-accumulate math."""
    f32, bf16 = jnp.float32, jnp.bfloat16
    ew = bf16 if bf16_epilogue else f32

    def mm(x, w):
        return jnp.dot(x.astype(bf16), w.astype(bf16), preferred_element_type=f32)

    def ep(acc, b, alpha=None):
        y = acc.astype(ew) + b.astype(ew)
        if alpha is not None:
            alpha = alpha.astype(ew)
            y = jnp.where(y > 0, y, alpha * y)
        return y

    a = params["alphas"]
    batch = s.shape[0]
    s_flat = s.reshape(batch, -1).astype(f32)
    h = ep(mm(pcs.astype(f32), params["enc_w0"]), params["enc_b0"], a[0])
    h = ep(mm(h, params["enc_w1"]), params["enc_b1"], a[1])
    h = ep(mm(h, params["enc_w2"]), params["enc_b2"])
    z = jnp.concatenate([s_flat, h.astype(f32)], axis=1)
    z = ep(mm(z, params["mlp_w0"]), params["mlp_b0"], a[2])
    z = ep(mm(z, params["mlp_w1"]), params["mlp_b1"], a[3])
    z = ep(mm(z, params["mlp_w2"]), params["mlp_b2"], a[4])
    z = ep(mm(z, params["mlp_w3"]), params["mlp_b3"], a[5])
    z = ep(mm(z, params["mlp_w4"]), params["mlp_b4"])
    return z.astype(f32)


if __name__ == "__main__":
    # Small, forward-consistent shapes; batch=24 with tile_batch=16 exercises a
    # 2-step batch grid with resident weights and batch-pad slicing.
    batch = 24
    state_shape = (4, 4)          # np.prod -> 16
    action_shape = (4,)           # np.prod -> 4
    map_feature_size = 32
    hidden_feature_size = 32
    state_dim = int(np.prod(state_shape))
    action_dim = int(np.prod(action_shape))

    key = jax.random.PRNGKey(0)
    k_s, k_pcs, k_params = jax.random.split(key, 3)

    s = jax.random.normal(k_s, (batch,) + state_shape, jnp.float32)
    pcs = jax.random.normal(k_pcs, (batch, map_feature_size), jnp.float32)
    params = init_params(k_params, state_dim, map_feature_size,
                         hidden_feature_size, action_dim)

    # f32 epilogue on v5 (no bf16 VPU), bf16 epilogue on v6e/v7x.
    bf16_ep = "v5" not in jax.devices()[0].device_kind.lower()

    logits, _ = sampler_pcs_forward(s, pcs, params, state_dim,
                                    hidden_feature_size, action_dim,
                                    tile_batch=16, bf16_epilogue=bf16_ep)
    logits = jax.block_until_ready(logits)

    ref = _reference_forward(s, pcs, params, state_dim, bf16_epilogue=bf16_ep)
    assert logits.shape == (batch, action_dim)
    tol = 2e-2 if bf16_ep else 5e-3
    np.testing.assert_allclose(np.asarray(logits), np.asarray(ref),
                               rtol=tol, atol=tol)
    print("KERNEL_OK")
</pallas_src>

<mosaic_0001>
module attributes {stable_mosaic.version = 11 : i64} {
  func.func @_sampler_pcs_kernel(%arg0: i32, %arg1: memref<6xf32, #tpu.memory_space<smem>>, %arg2: memref<16x48xbf16, #tpu.memory_space<vmem>>, %arg3: memref<32x256xbf16, #tpu.memory_space<vmem>>, %arg4: memref<256x128xbf16, #tpu.memory_space<vmem>>, %arg5: memref<128x32xbf16, #tpu.memory_space<vmem>>, %arg6: memref<16x512xbf16, #tpu.memory_space<vmem>>, %arg7: memref<32x512xbf16, #tpu.memory_space<vmem>>, %arg8: memref<512x256xbf16, #tpu.memory_space<vmem>>, %arg9: memref<256x128xbf16, #tpu.memory_space<vmem>>, %arg10: memref<128x64xbf16, #tpu.memory_space<vmem>>, %arg11: memref<64x128xbf16, #tpu.memory_space<vmem>>, %arg12: memref<8x512xbf16, #tpu.memory_space<vmem>>, %arg13: memref<16x128xf32, #tpu.memory_space<vmem>>) attributes {dimension_semantics = [#tpu.dimension_semantics<parallel>], iteration_bounds = array<i64: 2>, scalar_prefetch = 1 : i64, scratch_operands = 0 : i64, tpu.core_type = #tpu.core_type<tc>, window_params = [{transform_indices = @transform_0, window_bounds = array<i64: 16, 48>}, {pipeline_mode = #tpu.pipeline_mode<synchronous>, transform_indices = @transform_1, window_bounds = array<i64: 32, 256>}, {pipeline_mode = #tpu.pipeline_mode<synchronous>, transform_indices = @transform_2, window_bounds = array<i64: 256, 128>}, {pipeline_mode = #tpu.pipeline_mode<synchronous>, transform_indices = @transform_3, window_bounds = array<i64: 128, 32>}, {pipeline_mode = #tpu.pipeline_mode<synchronous>, transform_indices = @transform_4, window_bounds = array<i64: 16, 512>}, {pipeline_mode = #tpu.pipeline_mode<synchronous>, transform_indices = @transform_5, window_bounds = array<i64: 32, 512>}, {pipeline_mode = #tpu.pipeline_mode<synchronous>, transform_indices = @transform_6, window_bounds = array<i64: 512, 256>}, {pipeline_mode = #tpu.pipeline_mode<synchronous>, transform_indices = @transform_7, window_bounds = array<i64: 256, 128>}, {pipeline_mode = #tpu.pipeline_mode<synchronous>, transform_indices = @transform_8, window_bounds = array<i64: 128, 64>}, {pipeline_mode = #tpu.pipeline_mode<synchronous>, transform_indices = @transform_9, window_bounds = array<i64: 64, 128>}, {pipeline_mode = #tpu.pipeline_mode<synchronous>, transform_indices = @transform_10, window_bounds = array<i64: 8, 512>}, {transform_indices = @transform_11, window_bounds = array<i64: 16, 128>}]} {
    %c0 = arith.constant 0 : index
    %0 = memref.load %arg1[%c0] : memref<6xf32, #tpu.memory_space<smem>>
    %1 = arith.truncf %0 : f32 to bf16
    %c1 = arith.constant 1 : index
    %2 = memref.load %arg1[%c1] : memref<6xf32, #tpu.memory_space<smem>>
    %3 = arith.truncf %2 : f32 to bf16
    %c2 = arith.constant 2 : index
    %4 = memref.load %arg1[%c2] : memref<6xf32, #tpu.memory_space<smem>>
    %5 = arith.truncf %4 : f32 to bf16
    %c3 = arith.constant 3 : index
    %6 = memref.load %arg1[%c3] : memref<6xf32, #tpu.memory_space<smem>>
    %7 = arith.truncf %6 : f32 to bf16
    %c4 = arith.constant 4 : index
    %8 = memref.load %arg1[%c4] : memref<6xf32, #tpu.memory_space<smem>>
    %9 = arith.truncf %8 : f32 to bf16
    %c5 = arith.constant 5 : index
    %10 = memref.load %arg1[%c5] : memref<6xf32, #tpu.memory_space<smem>>
    %11 = arith.truncf %10 : f32 to bf16
    %c0_0 = arith.constant 0 : index
    %c0_1 = arith.constant 0 : index
    %12 = vector.load %arg2[%c0_0, %c0_1] : memref<16x48xbf16, #tpu.memory_space<vmem>>, vector<16x16xbf16>
    %c0_2 = arith.constant 0 : index
    %c16 = arith.constant 16 : index
    %13 = vector.load %arg2[%c0_2, %c16] : memref<16x48xbf16, #tpu.memory_space<vmem>>, vector<16x32xbf16>
    %c0_3 = arith.constant 0 : index
    %c0_4 = arith.constant 0 : index
    %14 = vector.load %arg3[%c0_3, %c0_4] : memref<32x256xbf16, #tpu.memory_space<vmem>>, vector<32x256xbf16>
    %cst = arith.constant dense<0.000000e+00> : vector<16x256xf32>
    %15 = tpu.matmul %13, %14, %cst {dimension_numbers = #tpu.dot_dimension_numbers<[1], [0], [0], [1], [0, 0, 1, 1], [], []>} : vector<16x32xbf16>, vector<32x256xbf16>, vector<16x256xf32> -> vector<16x256xf32>
    %16 = arith.truncf %15 : vector<16x256xf32> to vector<16x256xbf16>
    %c0_5 = arith.constant 0 : index
    %c0_6 = arith.constant 0 : index
    %17 = vector.load %arg12[%c0_5, %c0_6] : memref<8x512xbf16, #tpu.memory_space<vmem>>, vector<1x256xbf16>
    %18 = vector.broadcast %17 : vector<1x256xbf16> to vector<16x256xbf16>
    %19 = arith.addf %16, %18 : vector<16x256xbf16>
    %cst_7 = arith.constant 0.000000e+00 : bf16
    %20 = vector.broadcast %cst_7 : bf16 to vector<16x256xbf16>
    %21 = arith.cmpf ogt, %19, %20 : vector<16x256xbf16>
    %22 = vector.broadcast %1 : bf16 to vector<16x256xbf16>
    %23 = arith.mulf %22, %19 : vector<16x256xbf16>
    %24 = arith.select %21, %19, %23 : vector<16x256xi1>, vector<16x256xbf16>
    %c0_8 = arith.constant 0 : index
    %c0_9 = arith.constant 0 : index
    %25 = vector.load %arg4[%c0_8, %c0_9] : memref<256x128xbf16, #tpu.memory_space<vmem>>, vector<256x128xbf16>
    %cst_10 = arith.constant dense<0.000000e+00> : vector<16x128xf32>
    %26 = tpu.matmul %24, %25, %cst_10 {dimension_numbers = #tpu.dot_dimension_numbers<[1], [0], [0], [1], [0, 0, 1, 1], [], []>} : vector<16x256xbf16>, vector<256x128xbf16>, vector<16x128xf32> -> vector<16x128xf32>
    %27 = arith.truncf %26 : vector<16x128xf32> to vector<16x128xbf16>
    %c1_11 = arith.constant 1 : index
    %c0_12 = arith.constant 0 : index
    %28 = vector.load %arg12[%c1_11, %c0_12] : memref<8x512xbf16, #tpu.memory_space<vmem>>, vector<1x128xbf16>
    %29 = vector.broadcast %28 : vector<1x128xbf16> to vector<16x128xbf16>
    %30 = arith.addf %27, %29 : vector<16x128xbf16>
    %cst_13 = arith.constant 0.000000e+00 : bf16
    %31 = vector.broadcast %cst_13 : bf16 to vector<16x128xbf16>
    %32 = arith.cmpf ogt, %30, %31 : vector<16x128xbf16>
    %33 = vector.broadcast %3 : bf16 to vector<16x128xbf16>
    %34 = arith.mulf %33, %30 : vector<16x128xbf16>
    %35 = arith.select %32, %30, %34 : vector<16x128xi1>, vector<16x128xbf16>
    %c0_14 = arith.constant 0 : index
    %c0_15 = arith.constant 0 : index
    %36 = vector.load %arg5[%c0_14, %c0_15] : memref<128x32xbf16, #tpu.memory_space<vmem>>, vector<128x32xbf16>
    %cst_16 = arith.constant dense<0.000000e+00> : vector<16x32xf32>
    %37 = tpu.matmul %35, %36, %cst_16 {dimension_numbers = #tpu.dot_dimension_numbers<[1], [0], [0], [1], [0, 0, 1, 1], [], []>} : vector<16x128xbf16>, vector<128x32xbf16>, vector<16x32xf32> -> vector<16x32xf32>
    %38 = arith.truncf %37 : vector<16x32xf32> to vector<16x32xbf16>
    %c2_17 = arith.constant 2 : index
    %c0_18 = arith.constant 0 : index
    %39 = vector.load %arg12[%c2_17, %c0_18] : memref<8x512xbf16, #tpu.memory_space<vmem>>, vector<1x32xbf16>
    %40 = vector.broadcast %39 : vector<1x32xbf16> to vector<16x32xbf16>
    %41 = arith.addf %38, %40 : vector<16x32xbf16>
    %c0_19 = arith.constant 0 : index
    %c0_20 = arith.constant 0 : index
    %42 = vector.load %arg6[%c0_19, %c0_20] : memref<16x512xbf16, #tpu.memory_space<vmem>>, vector<16x512xbf16>
    %cst_21 = arith.constant dense<0.000000e+00> : vector<16x512xf32>
    %43 = tpu.matmul %12, %42, %cst_21 {dimension_numbers = #tpu.dot_dimension_numbers<[1], [0], [0], [1], [0, 0, 1, 1], [], []>} : vector<16x16xbf16>, vector<16x512xbf16>, vector<16x512xf32> -> vector<16x512xf32>
    %c0_22 = arith.constant 0 : index
    %c0_23 = arith.constant 0 : index
    %44 = vector.load %arg7[%c0_22, %c0_23] : memref<32x512xbf16, #tpu.memory_space<vmem>>, vector<32x512xbf16>
    %cst_24 = arith.constant dense<0.000000e+00> : vector<16x512xf32>
    %45 = tpu.matmul %41, %44, %cst_24 {dimension_numbers = #tpu.dot_dimension_numbers<[1], [0], [0], [1], [0, 0, 1, 1], [], []>} : vector<16x32xbf16>, vector<32x512xbf16>, vector<16x512xf32> -> vector<16x512xf32>
    %46 = arith.addf %43, %45 : vector<16x512xf32>
    %47 = arith.truncf %46 : vector<16x512xf32> to vector<16x512xbf16>
    %c3_25 = arith.constant 3 : index
    %c0_26 = arith.constant 0 : index
    %48 = vector.load %arg12[%c3_25, %c0_26] : memref<8x512xbf16, #tpu.memory_space<vmem>>, vector<1x512xbf16>
    %49 = vector.broadcast %48 : vector<1x512xbf16> to vector<16x512xbf16>
    %50 = arith.addf %47, %49 : vector<16x512xbf16>
    %cst_27 = arith.constant 0.000000e+00 : bf16
    %51 = vector.broadcast %cst_27 : bf16 to vector<16x512xbf16>
    %52 = arith.cmpf ogt, %50, %51 : vector<16x512xbf16>
    %53 = vector.broadcast %5 : bf16 to vector<16x512xbf16>
    %54 = arith.mulf %53, %50 : vector<16x512xbf16>
    %55 = arith.select %52, %50, %54 : vector<16x512xi1>, vector<16x512xbf16>
    %c0_28 = arith.constant 0 : index
    %c0_29 = arith.constant 0 : index
    %56 = vector.load %arg8[%c0_28, %c0_29] : memref<512x256xbf16, #tpu.memory_space<vmem>>, vector<512x256xbf16>
    %cst_30 = arith.constant dense<0.000000e+00> : vector<16x256xf32>
    %57 = tpu.matmul %55, %56, %cst_30 {dimension_numbers = #tpu.dot_dimension_numbers<[1], [0], [0], [1], [0, 0, 1, 1], [], []>} : vector<16x512xbf16>, vector<512x256xbf16>, vector<16x256xf32> -> vector<16x256xf32>
    %58 = arith.truncf %57 : vector<16x256xf32> to vector<16x256xbf16>
    %c4_31 = arith.constant 4 : index
    %c0_32 = arith.constant 0 : index
    %59 = vector.load %arg12[%c4_31, %c0_32] : memref<8x512xbf16, #tpu.memory_space<vmem>>, vector<1x256xbf16>
    %60 = vector.broadcast %59 : vector<1x256xbf16> to vector<16x256xbf16>
    %61 = arith.addf %58, %60 : vector<16x256xbf16>
    %cst_33 = arith.constant 0.000000e+00 : bf16
    %62 = vector.broadcast %cst_33 : bf16 to vector<16x256xbf16>
    %63 = arith.cmpf ogt, %61, %62 : vector<16x256xbf16>
    %64 = vector.broadcast %7 : bf16 to vector<16x256xbf16>
    %65 = arith.mulf %64, %61 : vector<16x256xbf16>
    %66 = arith.select %63, %61, %65 : vector<16x256xi1>, vector<16x256xbf16>
    %c0_34 = arith.constant 0 : index
    %c0_35 = arith.constant 0 : index
    %67 = vector.load %arg9[%c0_34, %c0_35] : memref<256x128xbf16, #tpu.memory_space<vmem>>, vector<256x128xbf16>
    %cst_36 = arith.constant dense<0.000000e+00> : vector<16x128xf32>
    %68 = tpu.matmul %66, %67, %cst_36 {dimension_numbers = #tpu.dot_dimension_numbers<[1], [0], [0], [1], [0, 0, 1, 1], [], []>} : vector<16x256xbf16>, vector<256x128xbf16>, vector<16x128xf32> -> vector<16x128xf32>
    %69 = arith.truncf %68 : vector<16x128xf32> to vector<16x128xbf16>
    %c5_37 = arith.constant 5 : index
    %c0_38 = arith.constant 0 : index
    %70 = vector.load %arg12[%c5_37, %c0_38] : memref<8x512xbf16, #tpu.memory_space<vmem>>, vector<1x128xbf16>
    %71 = vector.broadcast %70 : vector<1x128xbf16> to vector<16x128xbf16>
    %72 = arith.addf %69, %71 : vector<16x128xbf16>
    %cst_39 = arith.constant 0.000000e+00 : bf16
    %73 = vector.broadcast %cst_39 : bf16 to vector<16x128xbf16>
    %74 = arith.cmpf ogt, %72, %73 : vector<16x128xbf16>
    %75 = vector.broadcast %9 : bf16 to vector<16x128xbf16>
    %76 = arith.mulf %75, %72 : vector<16x128xbf16>
    %77 = arith.select %74, %72, %76 : vector<16x128xi1>, vector<16x128xbf16>
    %c0_40 = arith.constant 0 : index
    %c0_41 = arith.constant 0 : index
    %78 = vector.load %arg10[%c0_40, %c0_41] : memref<128x64xbf16, #tpu.memory_space<vmem>>, vector<128x64xbf16>
    %cst_42 = arith.constant dense<0.000000e+00> : vector<16x64xf32>
    %79 = tpu.matmul %77, %78, %cst_42 {dimension_numbers = #tpu.dot_dimension_numbers<[1], [0], [0], [1], [0, 0, 1, 1], [], []>} : vector<16x128xbf16>, vector<128x64xbf16>, vector<16x64xf32> -> vector<16x64xf32>
    %80 = arith.truncf %79 : vector<16x64xf32> to vector<16x64xbf16>
    %c6 = arith.constant 6 : index
    %c0_43 = arith.constant 0 : index
    %81 = vector.load %arg12[%c6, %c0_43] : memref<8x512xbf16, #tpu.memory_space<vmem>>, vector<1x64xbf16>
    %82 = vector.broadcast %81 : vector<1x64xbf16> to vector<16x64xbf16>
    %83 = arith.addf %80, %82 : vector<16x64xbf16>
    %cst_44 = arith.constant 0.000000e+00 : bf16
    %84 = vector.broadcast %cst_44 : bf16 to vector<16x64xbf16>
    %85 = arith.cmpf ogt, %83, %84 : vector<16x64xbf16>
    %86 = vector.broadcast %11 : bf16 to vector<16x64xbf16>
    %87 = arith.mulf %86, %83 : vector<16x64xbf16>
    %88 = arith.select %85, %83, %87 : vector<16x64xi1>, vector<16x64xbf16>
    %c0_45 = arith.constant 0 : index
    %c0_46 = arith.constant 0 : index
    %89 = vector.load %arg11[%c0_45, %c0_46] : memref<64x128xbf16, #tpu.memory_space<vmem>>, vector<64x128xbf16>
    %cst_47 = arith.constant dense<0.000000e+00> : vector<16x128xf32>
    %90 = tpu.matmul %88, %89, %cst_47 {dimension_numbers = #tpu.dot_dimension_numbers<[1], [0], [0], [1], [0, 0, 1, 1], [], []>} : vector<16x64xbf16>, vector<64x128xbf16>, vector<16x128xf32> -> vector<16x128xf32>
    %91 = arith.truncf %90 : vector<16x128xf32> to vector<16x128xbf16>
    %c7 = arith.constant 7 : index
    %c0_48 = arith.constant 0 : index
    %92 = vector.load %arg12[%c7, %c0_48] : memref<8x512xbf16, #tpu.memory_space<vmem>>, vector<1x128xbf16>
    %93 = vector.broadcast %92 : vector<1x128xbf16> to vector<16x128xbf16>
    %94 = arith.addf %91, %93 : vector<16x128xbf16>
    %95 = arith.extf %94 : vector<16x128xbf16> to vector<16x128xf32>
    %c0_49 = arith.constant 0 : index
    %c0_50 = arith.constant 0 : index
    %96 = vector.load %arg13[%c0_49, %c0_50] : memref<16x128xf32, #tpu.memory_space<vmem>>, vector<16x128xf32>
    tpu.vector_store %arg13[%c0_49, %c0_50], %95 {strides = array<i32>} : memref<16x128xf32, #tpu.memory_space<vmem>>, vector<16x128xf32>,
    return
  }
  func.func @transform_0(%arg0: i32, %arg1: memref<6xf32, #tpu.memory_space<smem>>) -> (i32, i32) {
    %c0_i32 = arith.constant 0 : i32
    %c0_i32_0 = arith.constant 0 : i32
    return %arg0, %c0_i32 : i32, i32
  }
  func.func @transform_1(%arg0: i32, %arg1: memref<6xf32, #tpu.memory_space<smem>>) -> (i32, i32) {
    %c0_i32 = arith.constant 0 : i32
    %c0_i32_0 = arith.constant 0 : i32
    %c0_i32_1 = arith.constant 0 : i32
    return %c0_i32, %c0_i32_0 : i32, i32
  }
  func.func @transform_2(%arg0: i32, %arg1: memref<6xf32, #tpu.memory_space<smem>>) -> (i32, i32) {
    %c0_i32 = arith.constant 0 : i32
    %c0_i32_0 = arith.constant 0 : i32
    %c0_i32_1 = arith.constant 0 : i32
    return %c0_i32, %c0_i32_0 : i32, i32
  }
  func.func @transform_3(%arg0: i32, %arg1: memref<6xf32, #tpu.memory_space<smem>>) -> (i32, i32) {
    %c0_i32 = arith.constant 0 : i32
    %c0_i32_0 = arith.constant 0 : i32
    %c0_i32_1 = arith.constant 0 : i32
    return %c0_i32, %c0_i32_0 : i32, i32
  }
  func.func @transform_4(%arg0: i32, %arg1: memref<6xf32, #tpu.memory_space<smem>>) -> (i32, i32) {
    %c0_i32 = arith.constant 0 : i32
    %c0_i32_0 = arith.constant 0 : i32
    %c0_i32_1 = arith.constant 0 : i32
    return %c0_i32, %c0_i32_0 : i32, i32
  }
  func.func @transform_5(%arg0: i32, %arg1: memref<6xf32, #tpu.memory_space<smem>>) -> (i32, i32) {
    %c0_i32 = arith.constant 0 : i32
    %c0_i32_0 = arith.constant 0 : i32
    %c0_i32_1 = arith.constant 0 : i32
    return %c0_i32, %c0_i32_0 : i32, i32
  }
  func.func @transform_6(%arg0: i32, %arg1: memref<6xf32, #tpu.memory_space<smem>>) -> (i32, i32) {
    %c0_i32 = arith.constant 0 : i32
    %c0_i32_0 = arith.constant 0 : i32
    %c0_i32_1 = arith.constant 0 : i32
    return %c0_i32, %c0_i32_0 : i32, i32
  }
  func.func @transform_7(%arg0: i32, %arg1: memref<6xf32, #tpu.memory_space<smem>>) -> (i32, i32) {
    %c0_i32 = arith.constant 0 : i32
    %c0_i32_0 = arith.constant 0 : i32
    %c0_i32_1 = arith.constant 0 : i32
    return %c0_i32, %c0_i32_0 : i32, i32
  }
  func.func @transform_8(%arg0: i32, %arg1: memref<6xf32, #tpu.memory_space<smem>>) -> (i32, i32) {
    %c0_i32 = arith.constant 0 : i32
    %c0_i32_0 = arith.constant 0 : i32
    %c0_i32_1 = arith.constant 0 : i32
    return %c0_i32, %c0_i32_0 : i32, i32
  }
  func.func @transform_9(%arg0: i32, %arg1: memref<6xf32, #tpu.memory_space<smem>>) -> (i32, i32) {
    %c0_i32 = arith.constant 0 : i32
    %c0_i32_0 = arith.constant 0 : i32
    %c0_i32_1 = arith.constant 0 : i32
    return %c0_i32, %c0_i32_0 : i32, i32
  }
  func.func @transform_10(%arg0: i32, %arg1: memref<6xf32, #tpu.memory_space<smem>>) -> (i32, i32) {
    %c0_i32 = arith.constant 0 : i32
    %c0_i32_0 = arith.constant 0 : i32
    %c0_i32_1 = arith.constant 0 : i32
    return %c0_i32, %c0_i32_0 : i32, i32
  }
  func.func @transform_11(%arg0: i32, %arg1: memref<6xf32, #tpu.memory_space<smem>>) -> (i32, i32) {
    %c0_i32 = arith.constant 0 : i32
    %c0_i32_0 = arith.constant 0 : i32
    return %arg0, %c0_i32 : i32, i32
  }
}

</mosaic_0001>

<llo_original>
// kernel: tpu_custom_call.1
$region0: #{tpu_custom_call.1}
  #allocation0 [shape = 'u32[]', space=smem, size = 0x4, offset = 0x4, fixed_abs, tag = 'smem constant byte address 0x4 - core index']
  #allocation1 [shape = 'u32[144,128]{1,0:T(1,128)}', space=vmem, size = 0x12000, scoped, tag = 'internal scratch']
  #allocation2 [shape = 's32[1]{0}', space=sflag, size = 0x4, scoped, tag = 'scoped memory for tpu_custom_call.1']
  #allocation3 [shape = 'u8[512]{0}', space=smem, size = 0x200, scoped, tag = 'prefetched SMEM operand 0']
  %s0 = inlined_call_operand.vmem [shape: f32[6], index: 0, kind: input, shape index: {}]
  %s1 = inlined_call_operand.hbm [shape: bf16[32,48], index: 1, kind: input, shape index: {}]
  %s2 = inlined_call_operand.hbm [shape: bf16[32,256], index: 2, kind: input, shape index: {}]
  %s3 = inlined_call_operand.vmem [shape: bf16[256,128], index: 3, kind: input, shape index: {}]
  %s4 = inlined_call_operand.vmem [shape: bf16[128,32], index: 4, kind: input, shape index: {}]
  %s5 = inlined_call_operand.hbm [shape: bf16[16,512], index: 5, kind: input, shape index: {}]
  %s6 = inlined_call_operand.vmem [shape: bf16[32,512], index: 6, kind: input, shape index: {}]
  %s7 = inlined_call_operand.hbm [shape: bf16[512,256], index: 7, kind: input, shape index: {}]
  %s8 = inlined_call_operand.hbm [shape: bf16[256,128], index: 8, kind: input, shape index: {}]
  %s9 = inlined_call_operand.vmem [shape: bf16[128,64], index: 9, kind: input, shape index: {}]
  %s10 = inlined_call_operand.hbm [shape: bf16[64,128], index: 10, kind: input, shape index: {}]
  %s11 = inlined_call_operand.vmem [shape: bf16[8,512], index: 11, kind: input, shape index: {}]
  %s12 = inlined_call_operand.hbm [shape: f32[32,128], index: 12, kind: output, shape index: {}]
  %s13 = sld [smem:[#allocation0]]
  $region101: #{tpu_custom_call.1} parent=0
    _
  %s15 = ssub.s32 1, %s13
  %s16 = scalar_select 0, %s15, %s13
  %s17 = sshll.u32 %s0, 4
  %s18 = int_to_ptr.vmem [resolvable:$true] %s17
  %20 = dma.vmem_to_smem %s18, 16, [#allocation3], [#allocation2]
  %21 = dma.done [#allocation2], 16
  %22 = sfence
  $region1: #{tpu_custom_call.1} parent=0
    #allocation4 [shape = 'u8[8192]{0}', space=vmem, size = 0x2000, scoped, tag = 'input window, operand 1']
    #allocation5 [shape = 's32[2]{0}', space=sflag, size = 0x8, scoped, tag = 'scoped memory for tpu_custom_call.1']
    #allocation6 [shape = 's32[2]{0}', space=sflag, size = 0x8, scoped, tag = 'scoped memory for tpu_custom_call.1']
    #allocation7 [shape = 'u8[16384]{0}', space=vmem, size = 0x4000, scoped, tag = 'input window, operand 2, single buffered']
    #allocation8 [shape = 's32[1]{0}', space=sflag, size = 0x4, scoped, tag = 'scoped memory for tpu_custom_call.1']
    #allocation9 [shape = 'u8[16384]{0}', space=vmem, size = 0x4000, scoped, tag = 'input window, operand 5, single buffered']
    #allocation10 [shape = 'u8[262144]{0}', space=vmem, size = 0x40000, scoped, tag = 'input window, operand 7, single buffered']
    #allocation11 [shape = 's32[1]{0}', space=sflag, size = 0x4, scoped, tag = 'scoped memory for tpu_custom_call.1']
    #allocation12 [shape = 'u8[65536]{0}', space=vmem, size = 0x10000, scoped, tag = 'input window, operand 8, single buffered']
    #allocation13 [shape = 'u8[16384]{0}', space=vmem, size = 0x4000, scoped, tag = 'input window, operand 10, single buffered']
    #allocation14 [shape = 's32[1]{0}', space=sflag, size = 0x4, scoped, tag = 'scoped memory for tpu_custom_call.1']
    #allocation15 [shape = 'u8[16384]{0}', space=vmem, size = 0x4000, scoped, tag = 'output window, operand 0']
    %23 = vsyncpa [#allocation5], 0
    %s24 = scalar_lea.sflag [#allocation5], 1
    %25 = vsyncpa %s24, 0
    %26 = vsyncpa [#allocation8], 0
    %27 = vsyncpa [#allocation11], 0
    %28 = vsyncpa [#allocation14], 0
    %29 = vsyncpa [#allocation6], 0
    %s30 = scalar_lea.sflag [#allocation6], 1
    %31 = vsyncpa %s30, 0
    loop: start=0, step=1, limit=4
    $region2: #{tpu_custom_call.1} parent=1 // loop_pre_header
      _
    $region3: #{tpu_custom_call.1} parent=1 // loop_header
      %s33 = sphi 0, %s37
      %p34 = scmp.ge.s32.totalorder %s33, 4
      %s43 = sphi 0, %s45
      %s46 = sphi 0, %s43
      %s47 = sphi 0, %s46
      %s63 = sphi 0, %s47
      %s67 = sphi 0, %s67
      %s69 = sphi 0, %s67
      %s70 = sphi 0, %s69
      %s84 = sphi 0, %s70
      %s88 = sphi 0, %s88
      %s90 = sphi 0, %s88
      %s91 = sphi 0, %s90
      %s105 = sphi 0, %s91
      %s109 = sphi 0, %s109
      %s111 = sphi 0, %s109
      %s112 = sphi 0, %s111
      %s126 = sphi 0, %s112
      %s130 = sphi 0, %s130
      %s132 = sphi 0, %s130
      %s133 = sphi 0, %s132
      %s147 = sphi 0, %s133
      %s151 = sphi 0, %s151
      %s153 = sphi 0, %s151
      %s154 = sphi 0, %s153
      %s168 = sphi 0, %s154
      %s172 = sphi 0, %s172
      %s174 = sphi 0, %s172
      %s175 = sphi 0, %s174
      %s189 = sphi 0, %s175
      %s193 = sphi 0, %s193
      %s195 = sphi 0, %s193
      %s196 = sphi 0, %s195
      %s210 = sphi 0, %s196
      %s214 = sphi 0, %s214
      %s216 = sphi 0, %s214
      %s217 = sphi 0, %s216
      %s231 = sphi 0, %s217
      %s235 = sphi 0, %s235
      %s237 = sphi 0, %s235
      %s238 = sphi 0, %s237
      %s252 = sphi 0, %s238
      %s256 = sphi 0, %s256
      %s258 = sphi 0, %s256
      %s259 = sphi 0, %s258
      %s273 = sphi 0, %s259
      %s279 = sphi 0, %s281
      %s282 = sphi 0, %s279
      %s283 = sphi 0, %s282
      %s299 = sphi 0, %s283
    $region4: #{tpu_custom_call.1} parent=1 // loop_header_branch
      %36 = sbr.rel (%p34) target = $region8
    $region5: #{tpu_custom_call.1} parent=1 // loop_body
      %s38 = ssub.s32 %s33, 1
      %s39 = ssub.s32 %s33, 2
      %s40 = sadd.s32 %s33, 1
      %s41 = ssub.s32 %s33, %s40
      %p42 = scmp.eq.s32.totalorder %s41, 0
      %s44 = sadd.s32 %s43, 1
      %s45 = scalar_select %p42, %s43, %s44
      %p48 = pneg %p42
      %p49 = scmp.eq.s32.totalorder %s33, 1
      %p50 = por %p48, %p49
      %p51 = scmp.ne.s32.totalorder %s43, %s46
      %p52 = scmp.eq.s32.totalorder %s33, 0
      %p53 = por %p51, %p52
      %p54 = scmp.ne.s32.totalorder %s43, %s46
      %p55 = scmp.eq.s32.totalorder %s38, 1
      %p56 = por %p54, %p55
      %p57 = scmp.ne.s32.totalorder %s46, %s47
      %p58 = scmp.eq.s32.totalorder %s38, 0
      %p59 = por %p57, %p58
      %p60 = scmp.ne.s32.totalorder %s46, %s47
      %p61 = scmp.eq.s32.totalorder %s39, 1
      %p62 = por %p60, %p61
      %p64 = scmp.ne.s32.totalorder %s47, %s63
      %p65 = scmp.eq.s32.totalorder %s39, 0
      %p66 = por %p64, %p65
      %s68 = sadd.s32 %s67, 1
      %p71 = scmp.eq.s32.totalorder %s33, 1
      %p72 = scmp.ne.s32.totalorder %s67, %s69
      %p73 = scmp.eq.s32.totalorder %s33, 0
      %p74 = por %p72, %p73
      %p75 = scmp.ne.s32.totalorder %s67, %s69
      %p76 = scmp.eq.s32.totalorder %s38, 1
      %p77 = por %p75, %p76
      %p78 = scmp.ne.s32.totalorder %s69, %s70
      %p79 = scmp.eq.s32.totalorder %s38, 0
      %p80 = por %p78, %p79
      %p81 = scmp.ne.s32.totalorder %s69, %s70
      %p82 = scmp.eq.s32.totalorder %s39, 1
      %p83 = por %p81, %p82
      %p85 = scmp.ne.s32.totalorder %s70, %s84
      %p86 = scmp.eq.s32.totalorder %s39, 0
      %p87 = por %p85, %p86
      %s89 = sadd.s32 %s88, 1
      %p92 = scmp.eq.s32.totalorder %s33, 1
      %p93 = scmp.ne.s32.totalorder %s88, %s90
      %p94 = scmp.eq.s32.totalorder %s33, 0
      %p95 = por %p93, %p94
      %p96 = scmp.ne.s32.totalorder %s88, %s90
      %p97 = scmp.eq.s32.totalorder %s38, 1
      %p98 = por %p96, %p97
      %p99 = scmp.ne.s32.totalorder %s90, %s91
      %p100 = scmp.eq.s32.totalorder %s38, 0
      %p101 = por %p99, %p100
      %p102 = scmp.ne.s32.totalorder %s90, %s91
      %p103 = scmp.eq.s32.totalorder %s39, 1
      %p104 = por %p102, %p103
      %p106 = scmp.ne.s32.totalorder %s91, %s105
      %p107 = scmp.eq.s32.totalorder %s39, 0
      %p108 = por %p106, %p107
      %s110 = sadd.s32 %s109, 1
      %p113 = scmp.eq.s32.totalorder %s33, 1
      %p114 = scmp.ne.s32.totalorder %s109, %s111
      %p115 = scmp.eq.s32.totalorder %s33, 0
      %p116 = por %p114, %p115
      %p117 = scmp.ne.s32.totalorder %s109, %s111
      %p118 = scmp.eq.s32.totalorder %s38, 1
      %p119 = por %p117, %p118
      %p120 = scmp.ne.s32.totalorder %s111, %s112
      %p121 = scmp.eq.s32.totalorder %s38, 0
      %p122 = por %p120, %p121
      %p123 = scmp.ne.s32.totalorder %s111, %s112
      %p124 = scmp.eq.s32.totalorder %s39, 1
      %p125 = por %p123, %p124
      %p127 = scmp.ne.s32.totalorder %s112, %s126
      %p128 = scmp.eq.s32.totalorder %s39, 0
      %p129 = por %p127, %p128
      %s131 = sadd.s32 %s130, 1
      %p134 = scmp.eq.s32.totalorder %s33, 1
      %p135 = scmp.ne.s32.totalorder %s130, %s132
      %p136 = scmp.eq.s32.totalorder %s33, 0
      %p137 = por %p135, %p136
      %p138 = scmp.ne.s32.totalorder %s130, %s132
      %p139 = scmp.eq.s32.totalorder %s38, 1
      %p140 = por %p138, %p139
      %p141 = scmp.ne.s32.totalorder %s132, %s133
      %p142 = scmp.eq.s32.totalorder %s38, 0
      %p143 = por %p141, %p142
      %p144 = scmp.ne.s32.totalorder %s132, %s133
      %p145 = scmp.eq.s32.totalorder %s39, 1
      %p146 = por %p144, %p145
      %p148 = scmp.ne.s32.totalorder %s133, %s147
      %p149 = scmp.eq.s32.totalorder %s39, 0
      %p150 = por %p148, %p149
      %s152 = sadd.s32 %s151, 1
      %p155 = scmp.eq.s32.totalorder %s33, 1
      %p156 = scmp.ne.s32.totalorder %s151, %s153
      %p157 = scmp.eq.s32.totalorder %s33, 0
      %p158 = por %p156, %p157
      %p159 = scmp.ne.s32.totalorder %s151, %s153
      %p160 = scmp.eq.s32.totalorder %s38, 1
      %p161 = por %p159, %p160
      %p162 = scmp.ne.s32.totalorder %s153, %s154
      %p163 = scmp.eq.s32.totalorder %s38, 0
      %p164 = por %p162, %p163
      %p165 = scmp.ne.s32.totalorder %s153, %s154
      %p166 = scmp.eq.s32.totalorder %s39, 1
      %p167 = por %p165, %p166
      %p169 = scmp.ne.s32.totalorder %s154, %s168
      %p170 = scmp.eq.s32.totalorder %s39, 0
      %p171 = por %p169, %p170
      %s173 = sadd.s32 %s172, 1
      %p176 = scmp.eq.s32.totalorder %s33, 1
      %p177 = scmp.ne.s32.totalorder %s172, %s174
      %p178 = scmp.eq.s32.totalorder %s33, 0
      %p179 = por %p177, %p178
      %p180 = scmp.ne.s32.totalorder %s172, %s174
      %p181 = scmp.eq.s32.totalorder %s38, 1
      %p182 = por %p180, %p181
      %p183 = scmp.ne.s32.totalorder %s174, %s175
      %p184 = scmp.eq.s32.totalorder %s38, 0
      %p185 = por %p183, %p184
      %p186 = scmp.ne.s32.totalorder %s174, %s175
      %p187 = scmp.eq.s32.totalorder %s39, 1
      %p188 = por %p186, %p187
      %p190 = scmp.ne.s32.totalorder %s175, %s189
      %p191 = scmp.eq.s32.totalorder %s39, 0
      %p192 = por %p190, %p191
      %s194 = sadd.s32 %s193, 1
      %p197 = scmp.eq.s32.totalorder %s33, 1
      %p198 = scmp.ne.s32.totalorder %s193, %s195
      %p199 = scmp.eq.s32.totalorder %s33, 0
      %p200 = por %p198, %p199
      %p201 = scmp.ne.s32.totalorder %s193, %s195
      %p202 = scmp.eq.s32.totalorder %s38, 1
      %p203 = por %p201, %p202
      %p204 = scmp.ne.s32.totalorder %s195, %s196
      %p205 = scmp.eq.s32.totalorder %s38, 0
      %p206 = por %p204, %p205
      %p207 = scmp.ne.s32.totalorder %s195, %s196
      %p208 = scmp.eq.s32.totalorder %s39, 1
      %p209 = por %p207, %p208
      %p211 = scmp.ne.s32.totalorder %s196, %s210
      %p212 = scmp.eq.s32.totalorder %s39, 0
      %p213 = por %p211, %p212
      %s215 = sadd.s32 %s214, 1
      %p218 = scmp.eq.s32.totalorder %s33, 1
      %p219 = scmp.ne.s32.totalorder %s214, %s216
      %p220 = scmp.eq.s32.totalorder %s33, 0
      %p221 = por %p219, %p220
      %p222 = scmp.ne.s32.totalorder %s214, %s216
      %p223 = scmp.eq.s32.totalorder %s38, 1
      %p224 = por %p222, %p223
      %p225 = scmp.ne.s32.totalorder %s216, %s217
      %p226 = scmp.eq.s32.totalorder %s38, 0
      %p227 = por %p225, %p226
      %p228 = scmp.ne.s32.totalorder %s216, %s217
      %p229 = scmp.eq.s32.totalorder %s39, 1
      %p230 = por %p228, %p229
      %p232 = scmp.ne.s32.totalorder %s217, %s231
      %p233 = scmp.eq.s32.totalorder %s39, 0
      %p234 = por %p232, %p233
      %s236 = sadd.s32 %s235, 1
      %p239 = scmp.eq.s32.totalorder %s33, 1
      %p240 = scmp.ne.s32.totalorder %s235, %s237
      %p241 = scmp.eq.s32.totalorder %s33, 0
      %p242 = por %p240, %p241
      %p243 = scmp.ne.s32.totalorder %s235, %s237
      %p244 = scmp.eq.s32.totalorder %s38, 1
      %p245 = por %p243, %p244
      %p246 = scmp.ne.s32.totalorder %s237, %s238
      %p247 = scmp.eq.s32.totalorder %s38, 0
      %p248 = por %p246, %p247
      %p249 = scmp.ne.s32.totalorder %s237, %s238
      %p250 = scmp.eq.s32.totalorder %s39, 1
      %p251 = por %p249, %p250
      %p253 = scmp.ne.s32.totalorder %s238, %s252
      %p254 = scmp.eq.s32.totalorder %s39, 0
      %p255 = por %p253, %p254
      %s257 = sadd.s32 %s256, 1
      %p260 = scmp.eq.s32.totalorder %s33, 1
      %p261 = scmp.ne.s32.totalorder %s256, %s258
      %p262 = scmp.eq.s32.totalorder %s33, 0
      %p263 = por %p261, %p262
      %p264 = scmp.ne.s32.totalorder %s256, %s258
      %p265 = scmp.eq.s32.totalorder %s38, 1
      %p266 = por %p264, %p265
      %p267 = scmp.ne.s32.totalorder %s258, %s259
      %p268 = scmp.eq.s32.totalorder %s38, 0
      %p269 = por %p267, %p268
      %p270 = scmp.ne.s32.totalorder %s258, %s259
      %p271 = scmp.eq.s32.totalorder %s39, 1
      %p272 = por %p270, %p271
      %p274 = scmp.ne.s32.totalorder %s259, %s273
      %p275 = scmp.eq.s32.totalorder %s39, 0
      %p276 = por %p274, %p275
      %s277 = ssub.s32 %s33, %s40
      %p278 = scmp.eq.s32.totalorder %s277, 0
      %s280 = sadd.s32 %s279, 1
      %s281 = scalar_select %p278, %s279, %s280
      %p284 = pneg %p278
      %p285 = scmp.eq.s32.totalorder %s33, 1
      %p286 = por %p284, %p285
      %p287 = scmp.ne.s32.totalorder %s279, %s282
      %p288 = scmp.eq.s32.totalorder %s33, 0
      %p289 = por %p287, %p288
      %p290 = scmp.ne.s32.totalorder %s279, %s282
      %p291 = scmp.eq.s32.totalorder %s38, 1
      %p292 = por %p290, %p291
      %p293 = scmp.ne.s32.totalorder %s282, %s283
      %p294 = scmp.eq.s32.totalorder %s38, 0
      %p295 = por %p293, %p294
      %p296 = scmp.ne.s32.totalorder %s282, %s283
      %p297 = scmp.eq.s32.totalorder %s39, 1
      %p298 = por %p296, %p297
      %p300 = scmp.ne.s32.totalorder %s283, %s299
      %p301 = scmp.eq.s32.totalorder %s39, 0
      %p302 = por %p300, %p301
      %p303 = scmp.le.s32.totalorder 1, %s33
      %p304 = scmp.lt.s32.totalorder %s33, 3
      %p305 = pnand %p303, %p304
      %p306 = pneg %p305
      // Predicated region
      $region9: #{tpu_custom_call.1} parent=5 // pred_check
        _
      $region10: #{tpu_custom_call.1} parent=5 // pred_check_branch
        %308 = sbr.rel (%p305) target = $region12
      $region11: #{tpu_custom_call.1} parent=5 // pred_region
        %s309 = ssub.s32 %s33, 1
        // Predicated region
        $region13: #{tpu_custom_call.1} parent=11 // pred_check
          %p310 = pneg %p80
        $region14: #{tpu_custom_call.1} parent=11 // pred_check_branch
          %312 = sbr.rel (%p310) target = $region16
        $region15: #{tpu_custom_call.1} parent=11 // pred_region
          %s314 = ssub.s32 512, 512
          %315 = vsyncadd [#allocation8], %s314
          %s316 = sshll.u32 [#allocation7], 4
          %s317 = int_to_ptr.vmem [resolvable:$true] %s316
          %322 = dma.hbm_to_vmem [thread:$0]  %s2, 512, %s317, [#allocation8], 128, 128, 8
        $region16: #{tpu_custom_call.1} parent=11 // pred_fallthru
          _
        // Predicated region
        $region17: #{tpu_custom_call.1} parent=11 // pred_check
          %p323 = pneg %p101
        $region18: #{tpu_custom_call.1} parent=11 // pred_check_branch
          %325 = sbr.rel (%p323) target = $region20
        $region19: #{tpu_custom_call.1} parent=11 // pred_region
          _
        $region20: #{tpu_custom_call.1} parent=11 // pred_fallthru
          _
        // Predicated region
        $region21: #{tpu_custom_call.1} parent=11 // pred_check
          %p326 = pneg %p122
        $region22: #{tpu_custom_call.1} parent=11 // pred_check_branch
          %328 = sbr.rel (%p326) target = $region24
        $region23: #{tpu_custom_call.1} parent=11 // pred_region
          _
        $region24: #{tpu_custom_call.1} parent=11 // pred_fallthru
          _
        // Predicated region
        $region25: #{tpu_custom_call.1} parent=11 // pred_check
          %p329 = pneg %p143
        $region26: #{tpu_custom_call.1} parent=11 // pred_check_branch
          %331 = sbr.rel (%p329) target = $region28
        $region27: #{tpu_custom_call.1} parent=11 // pred_region
          %s333 = ssub.s32 512, 512
          %334 = vsyncadd [#allocation8], %s333
          %s335 = sshll.u32 [#allocation9], 4
          %s336 = int_to_ptr.vmem [resolvable:$true] %s335
          %341 = dma.hbm_to_vmem [thread:$0]  %s5, 512, %s336, [#allocation8], 256, 256, 16
        $region28: #{tpu_custom_call.1} parent=11 // pred_fallthru
          _
        // Predicated region
        $region29: #{tpu_custom_call.1} parent=11 // pred_check
          %p342 = pneg %p164
        $region30: #{tpu_custom_call.1} parent=11 // pred_check_branch
          %344 = sbr.rel (%p342) target = $region32
        $region31: #{tpu_custom_call.1} parent=11 // pred_region
          _
        $region32: #{tpu_custom_call.1} parent=11 // pred_fallthru
          _
        // Predicated region
        $region33: #{tpu_custom_call.1} parent=11 // pred_check
          %p345 = pneg %p185
        $region34: #{tpu_custom_call.1} parent=11 // pred_check_branch
          %347 = sbr.rel (%p345) target = $region36
        $region35: #{tpu_custom_call.1} parent=11 // pred_region
          %s349 = ssub.s32 8192, 8192
          %350 = vsyncadd [#allocation11], %s349
          %s351 = sshll.u32 [#allocation10], 4
          %s352 = int_to_ptr.vmem [resolvable:$true] %s351
          %357 = dma.hbm_to_vmem [thread:$0]  %s7, 8192, %s352, [#allocation11], 128, 128, 8
        $region36: #{tpu_custom_call.1} parent=11 // pred_fallthru
          _
        // Predicated region
        $region37: #{tpu_custom_call.1} parent=11 // pred_check
          %p358 = pneg %p206
        $region38: #{tpu_custom_call.1} parent=11 // pred_check_branch
          %360 = sbr.rel (%p358) target = $region40
        $region39: #{tpu_custom_call.1} parent=11 // pred_region
          %s362 = ssub.s32 2048, 2048
          %363 = vsyncadd [#allocation11], %s362
          %s364 = sshll.u32 [#allocation12], 4
          %s365 = int_to_ptr.vmem [resolvable:$true] %s364
          %370 = dma.hbm_to_vmem [thread:$0]  %s8, 2048, %s365, [#allocation11], 64, 64, 4
        $region40: #{tpu_custom_call.1} parent=11 // pred_fallthru
          _
        // Predicated region
        $region41: #{tpu_custom_call.1} parent=11 // pred_check
          %p371 = pneg %p227
        $region42: #{tpu_custom_call.1} parent=11 // pred_check_branch
          %373 = sbr.rel (%p371) target = $region44
        $region43: #{tpu_custom_call.1} parent=11 // pred_region
          _
        $region44: #{tpu_custom_call.1} parent=11 // pred_fallthru
          _
        // Predicated region
        $region45: #{tpu_custom_call.1} parent=11 // pred_check
          %p374 = pneg %p248
        $region46: #{tpu_custom_call.1} parent=11 // pred_check_branch
          %376 = sbr.rel (%p374) target = $region48
        $region47: #{tpu_custom_call.1} parent=11 // pred_region
          %s378 = ssub.s32 512, 512
          %379 = vsyncadd [#allocation14], %s378
          %s380 = sshll.u32 [#allocation13], 4
          %s381 = int_to_ptr.vmem [resolvable:$true] %s380
          %386 = dma.hbm_to_vmem [thread:$0]  %s10, 512, %s381, [#allocation14], 64, 64, 4
        $region48: #{tpu_custom_call.1} parent=11 // pred_fallthru
          _
        // Predicated region
        $region49: #{tpu_custom_call.1} parent=11 // pred_check
          %p387 = pneg %p269
        $region50: #{tpu_custom_call.1} parent=11 // pred_check_branch
          %389 = sbr.rel (%p387) target = $region52
        $region51: #{tpu_custom_call.1} parent=11 // pred_region
          _
        $region52: #{tpu_custom_call.1} parent=11 // pred_fallthru
          _
      $region12: #{tpu_custom_call.1} parent=5 // pred_fallthru
        _
      %p390 = scmp.lt.s32.totalorder %s33, 2
      // Predicated region
      $region53: #{tpu_custom_call.1} parent=5 // pred_check
        %p391 = pneg %p390
      $region54: #{tpu_custom_call.1} parent=5 // pred_check_branch
        %393 = sbr.rel (%p391) target = $region56
      $region55: #{tpu_custom_call.1} parent=5 // pred_region
        // Predicated region
        $region57: #{tpu_custom_call.1} parent=55 // pred_check
          %p394 = pneg %p53
        $region58: #{tpu_custom_call.1} parent=55 // pred_check_branch
          %396 = sbr.rel (%p394) target = $region60
        $region59: #{tpu_custom_call.1} parent=55 // pred_region
          %s397 = sand.u32 %s43, 1
          %s398 = scalar_lea.sflag [#allocation5], %s397
          %s399 = sand.u32 %s43, 1
          %s400 = smul.addr %s399, 8
          %s401 = scalar_lea.vmem [#allocation4], %s400
          %s402 = smul.u32 2, %s33
          %s404 = ssub.s32 128, 128
          %405 = vsyncadd %s398, %s404
          %s406 = smul.addr %s402, 64
          %s407 = scalar_lea.hbm %s1, %s406
          %s408 = sshll.u32 %s401, 4
          %s409 = int_to_ptr.vmem [resolvable:$true] %s408
          %414 = dma.hbm_to_vmem [thread:$0]  %s407, 128, %s409, %s398, 64, 64, 4
        $region60: #{tpu_custom_call.1} parent=55 // pred_fallthru
          _
      $region56: #{tpu_custom_call.1} parent=5 // pred_fallthru
        _
      %p415 = scmp.le.s32.totalorder 1, %s33
      %p416 = scmp.lt.s32.totalorder %s33, 3
      %p417 = pnand %p415, %p416
      %p418 = pneg %p417
      // Predicated region
      $region61: #{tpu_custom_call.1} parent=5 // pred_check
        _
      $region62: #{tpu_custom_call.1} parent=5 // pred_check_branch
        %420 = sbr.rel (%p417) target = $region64
      $region63: #{tpu_custom_call.1} parent=5 // pred_region
        %s421 = ssub.s32 %s33, 1
        %s422 = sand.u32 %s46, 1
        %s423 = scalar_lea.sflag [#allocation5], %s422
        %s424 = sand.u32 %s46, 1
        %s425 = smul.addr %s424, 8
        %s426 = scalar_lea.vmem [#allocation4], %s425
        // Predicated region
        $region65: #{tpu_custom_call.1} parent=63 // pred_check
          %p427 = pneg %p59
        $region66: #{tpu_custom_call.1} parent=63 // pred_check_branch
          %429 = sbr.rel (%p427) target = $region68
        $region67: #{tpu_custom_call.1} parent=63 // pred_region
          %430 = dma.done %s423, 128
        $region68: #{tpu_custom_call.1} parent=63 // pred_fallthru
          _
        // Predicated region
        $region69: #{tpu_custom_call.1} parent=63 // pred_check
          %p431 = pneg %p80
        $region70: #{tpu_custom_call.1} parent=63 // pred_check_branch
          %433 = sbr.rel (%p431) target = $region72
        $region71: #{tpu_custom_call.1} parent=63 // pred_region
          %434 = dma.done [#allocation8], 512
        $region72: #{tpu_custom_call.1} parent=63 // pred_fallthru
          _
        // Predicated region
        $region73: #{tpu_custom_call.1} parent=63 // pred_check
          %p435 = pneg %p143
        $region74: #{tpu_custom_call.1} parent=63 // pred_check_branch
          %437 = sbr.rel (%p435) target = $region76
        $region75: #{tpu_custom_call.1} parent=63 // pred_region
          %438 = dma.done [#allocation8], 512
        $region76: #{tpu_custom_call.1} parent=63 // pred_fallthru
          _
        // Predicated region
        $region77: #{tpu_custom_call.1} parent=63 // pred_check
          %p439 = pneg %p185
        $region78: #{tpu_custom_call.1} parent=63 // pred_check_branch
          %441 = sbr.rel (%p439) target = $region80
        $region79: #{tpu_custom_call.1} parent=63 // pred_region
          %442 = dma.done [#allocation11], 8192
        $region80: #{tpu_custom_call.1} parent=63 // pred_fallthru
          _
        // Predicated region
        $region81: #{tpu_custom_call.1} parent=63 // pred_check
          %p443 = pneg %p206
        $region82: #{tpu_custom_call.1} parent=63 // pred_check_branch
          %445 = sbr.rel (%p443) target = $region84
        $region83: #{tpu_custom_call.1} parent=63 // pred_region
          %446 = dma.done [#allocation11], 2048
        $region84: #{tpu_custom_call.1} parent=63 // pred_fallthru
          _
        // Predicated region
        $region85: #{tpu_custom_call.1} parent=63 // pred_check
          %p447 = pneg %p248
        $region86: #{tpu_custom_call.1} parent=63 // pred_check_branch
          %449 = sbr.rel (%p447) target = $region88
        $region87: #{tpu_custom_call.1} parent=63 // pred_region
          %450 = dma.done [#allocation14], 512
        $region88: #{tpu_custom_call.1} parent=63 // pred_fallthru
          _
        %s451 = sand.u32 %s46, 1
        %s452 = scalar_lea.sflag [#allocation5], %s451
        %s453 = sand.u32 %s46, 1
        %s454 = smul.addr %s453, 8
        %s455 = scalar_lea.vmem [#allocation4], %s454
        %p456 = pneg %p59
        %p457 = pneg %p56
        %p458 = pneg %p80
        %p459 = pneg %p77
        %p460 = pneg %p101
        %p461 = pneg %p98
        %p462 = pneg %p122
        %p463 = pneg %p119
        %p464 = pneg %p143
        %p465 = pneg %p140
        %p466 = pneg %p164
        %p467 = pneg %p161
        %p468 = pneg %p185
        %p469 = pneg %p182
        %p470 = pneg %p206
        %p471 = pneg %p203
        %p472 = pneg %p227
        %p473 = pneg %p224
        %p474 = pneg %p248
        %p475 = pneg %p245
        %p476 = pneg %p269
        %p477 = pneg %p266
        %p478 = pneg %p295
        %p479 = pneg %p292
        %s480 = sand.u32 %s282, 1
        %s481 = scalar_lea.sflag [#allocation6], %s480
        %s482 = sand.u32 %s282, 1
        %s483 = smul.addr %s482, 16
        %s484 = scalar_lea.vmem [#allocation15], %s483
        %s485 = smul.u32 2, %s38
        %s486 = smul.u32 2, %s38
        %s488 = sld [smem:[#allocation3]]
        %p490 = scmp.ne.f32.partialorder %s488, %s488
        %s491 = sshrl.u32 %s488, 16
        %s492 = sand.u32 %s491, 1
        %s493 = sadd.s32 32767, %s492
        %s494 = sadd.s32 %s488, %s493
        %s495 = sand.u32 %s494, 4294901760
        %s496 = scalar_select %p490, 2143289344, %s495
        %s498 = sshrl.u32 %s496, 16
        %s499 = sld [smem:[#allocation3 + $0x1]]
        %p501 = scmp.ne.f32.partialorder %s499, %s499
        %s502 = sshrl.u32 %s499, 16
        %s503 = sand.u32 %s502, 1
        %s504 = sadd.s32 32767, %s503
        %s505 = sadd.s32 %s499, %s504
        %s506 = sand.u32 %s505, 4294901760
        %s507 = scalar_select %p501, 2143289344, %s506
        %s509 = sshrl.u32 %s507, 16
        %s510 = sld [smem:[#allocation3 + $0x2]]
        %p512 = scmp.ne.f32.partialorder %s510, %s510
        %s513 = sshrl.u32 %s510, 16
        %s514 = sand.u32 %s513, 1
        %s515 = sadd.s32 32767, %s514
        %s516 = sadd.s32 %s510, %s515
        %s517 = sand.u32 %s516, 4294901760
        %s518 = scalar_select %p512, 2143289344, %s517
        %s520 = sshrl.u32 %s518, 16
        %s521 = sld [smem:[#allocation3 + $0x3]]
        %p523 = scmp.ne.f32.partialorder %s521, %s521
        %s524 = sshrl.u32 %s521, 16
        %s525 = sand.u32 %s524, 1
        %s526 = sadd.s32 32767, %s525
        %s527 = sadd.s32 %s521, %s526
        %s528 = sand.u32 %s527, 4294901760
        %s529 = scalar_select %p523, 2143289344, %s528
        %s531 = sshrl.u32 %s529, 16
        %s532 = sld [smem:[#allocation3 + $0x4]]
        %p534 = scmp.ne.f32.partialorder %s532, %s532
        %s535 = sshrl.u32 %s532, 16
        %s536 = sand.u32 %s535, 1
        %s537 = sadd.s32 32767, %s536
        %s538 = sadd.s32 %s532, %s537
        %s539 = sand.u32 %s538, 4294901760
        %s540 = scalar_select %p534, 2143289344, %s539
        %s542 = sshrl.u32 %s540, 16
        %s543 = sld [smem:[#allocation3 + $0x5]]
        %p545 = scmp.ne.f32.partialorder %s543, %s543
        %s546 = sshrl.u32 %s543, 16
        %s547 = sand.u32 %s546, 1
        %s548 = sadd.s32 32767, %s547
        %s549 = sadd.s32 %s543, %s548
        %s550 = sand.u32 %s549, 4294901760
        %s551 = scalar_select %p545, 2143289344, %s550
        %s553 = sshrl.u32 %s551, 16
        %v554 = vld [vmem:[%s426] sm:$0xf]
        %v555 = vld [vmem:[%s426 + $0x4] sm:$0xf]
        %v556 = vld [vmem:[#allocation7] sm:$0xff]
        %v557 = vld [vmem:[#allocation7 + $0x8] sm:$0xff]
        %v558 = vld [vmem:[#allocation7 + $0x10] sm:$0xff]
        %v559 = vld [vmem:[#allocation7 + $0x18] sm:$0xff]
        %v562 = vunpack.c.l.b16 %v554
        %v563 = vunpack.c.l.b16 %v555
        %v564 = vpack.c.b16 %v563, %v562
        %565 = vrot.lane.b32.xlu0 %v564, 112
        %v566 = vpop.permute.xlu0 %565
        %v571 = vunpack.c.l.b16 %v556
        %v572 = vunpack.c.h.b16 %v556
        %v573 = vunpack.c.l.b16 %v557
        %v574 = vunpack.c.h.b16 %v557
        %v575 = vunpack.c.l.b16 %v558
        %v576 = vunpack.c.h.b16 %v558
        %v577 = vunpack.c.l.b16 %v559
        %v578 = vunpack.c.h.b16 %v559
        %v579 = vpack.c.b16 %v573, %v571
        %v580 = vpack.c.b16 %v574, %v572
        %v581 = vpack.c.b16 %v577, %v575
        %v582 = vpack.c.b16 %v578, %v576
        %vm587 = vcmask 261120
        %v589 = vsel %vm587, %v566, 0
        %591 = vmatprep.subr.bf16.mxu0 %v580
        %592 = vmatpush1.bf16.msra.mxu0 %v579
        %593 = vmatprep.subr.bf16.mxu0 %v582
        %594 = vmatpush1.bf16.msra.mxu0 %v581
        %595 = vmatprep.subr.bf16.mxu0 0
        %596 = vmatpush1.bf16.msra.mxu0 0
        %597 = vmatprep.subr.bf16.mxu0 0
        %598 = vmatpush1.bf16.msra.mxu0 0
        %599 = vmatprep.subr.bf16.mxu0 0
        %600 = vmatpush1.bf16.msra.mxu0 0
        %601 = vmatprep.subr.bf16.mxu0 0
        %602 = vmatpush1.bf16.msra.mxu0 0
        %603 = vmatprep.subr.bf16.mxu0 0
        %604 = vmatpush1.bf16.msra.mxu0 0
        %605 = vmatprep.subr.bf16.mxu0 0
        %606 = vmatpush1.bf16.msra.mxu0 0
        %607 = vmatprep.subr.bf16.mxu0 0
        %608 = vmatpush1.bf16.msra.mxu0 0
        %609 = vmatprep.subr.bf16.mxu0 0
        %610 = vmatpush1.bf16.msra.mxu0 0
        %611 = vmatprep.subr.bf16.mxu0 0
        %612 = vmatpush1.bf16.msra.mxu0 0
        %613 = vmatprep.subr.bf16.mxu0 0
        %614 = vmatpush1.bf16.msra.mxu0 0
        %615 = vmatprep.subr.bf16.mxu0 0
        %616 = vmatpush1.bf16.msra.mxu0 0
        %617 = vmatprep.subr.bf16.mxu0 0
        %618 = vmatpush1.bf16.msra.mxu0 0
        %619 = vmatprep.subr.bf16.mxu0 0
        %620 = vmatpush1.bf16.msra.mxu0 0
        %621 = vmatprep.subr.bf16.mxu0 0
        %622 = vmatpush1.bf16.msra.mxu0 0
        %623 = vmatprep.mubr.bf16.mxu0 0
        %624 = vmatmul.mubr.bf16.gmra.mrb[0].mxu0 %v589
        %v625 = vpop.f32.mrb[0].mxu0
        %v626 = vadd.f32 0.0, %v625
        %v627 = vpop.f32.mrb[0].mxu0
        %v628 = vadd.f32 0.0, %v627
        %v629 = vpop.f32.mrb[0].mxu0
        %v630 = vadd.f32 0.0, %v629
        %v631 = vpop.f32.mrb[0].mxu0
        %v632 = vadd.f32 0.0, %v631
        %633 = vdwg.mxu0
        %v634 = vpack.c.bf16 %v630, %v626
        %v635 = vpack.c.bf16 %v632, %v628
        %v636 = vld [vmem:[%s11] sm:$0x11]
        %v638 = vunpack.c.l.b16 %v636
        %v639 = vunpack.c.h.b16 %v636
        %v640 = vpack.c.b16 %v638, %v638
        %v641 = vpack.c.b16 %v639, %v639
        %v643 = vpack.i.b16 %v640, %v640
        %v645 = vlaneseq
        %v646 = vshrl.u32 %v645, 7
        %v647 = vsub.s32 0, %v646
        %v648 = vrot.slane %v643, %v647
        %v650 = vpack.i.b16 %v641, %v641
        %v652 = vlaneseq
        %v653 = vshrl.u32 %v652, 7
        %v654 = vsub.s32 0, %v653
        %v655 = vrot.slane %v650, %v654
        %v656 = vadd.bf16 %v634, %v648
        %v657 = vadd.bf16 %v635, %v655
        %vm658 = vcmp.gt.bf16.partialorder %v656, 0
        %vm659 = vcmp.gt.bf16.partialorder %v657, 0
        %s660 = sshll.u32 %s498, 16
        %s661 = sor.u32 %s498, %s660
        %v662 = vstv %s661
        %v664 = vmul.bf16 %v662, %v656
        %v665 = vmul.bf16 %v662, %v657
        %v666 = vsel %vm658, %v656, %v664
        %v667 = vsel %vm659, %v657, %v665
        %v668 = vld [vmem:[%s3] sm:$0xf]
        %v669 = vld [vmem:[%s3 + $0x4] sm:$0xf]
        %v670 = vld [vmem:[%s3 + $0x8] sm:$0xf]
        %v671 = vld [vmem:[%s3 + $0xc] sm:$0xf]
        %v672 = vld [vmem:[%s3 + $0x10] sm:$0xf]
        %v673 = vld [vmem:[%s3 + $0x14] sm:$0xf]
        %v674 = vld [vmem:[%s3 + $0x18] sm:$0xf]
        %v675 = vld [vmem:[%s3 + $0x1c] sm:$0xf]
        %v676 = vld [vmem:[%s3 + $0x20] sm:$0xf]
        %v677 = vld [vmem:[%s3 + $0x24] sm:$0xf]
        %v678 = vld [vmem:[%s3 + $0x28] sm:$0xf]
        %v679 = vld [vmem:[%s3 + $0x2c] sm:$0xf]
        %v680 = vld [vmem:[%s3 + $0x30] sm:$0xf]
        %v681 = vld [vmem:[%s3 + $0x34] sm:$0xf]
        %v682 = vld [vmem:[%s3 + $0x38] sm:$0xf]
        %v683 = vld [vmem:[%s3 + $0x3c] sm:$0xf]
        %v684 = vld [vmem:[%s3 + $0x40] sm:$0xf]
        %v685 = vld [vmem:[%s3 + $0x44] sm:$0xf]
        %v686 = vld [vmem:[%s3 + $0x48] sm:$0xf]
        %v687 = vld [vmem:[%s3 + $0x4c] sm:$0xf]
        %v688 = vld [vmem:[%s3 + $0x50] sm:$0xf]
        %v689 = vld [vmem:[%s3 + $0x54] sm:$0xf]
        %v690 = vld [vmem:[%s3 + $0x58] sm:$0xf]
        %v691 = vld [vmem:[%s3 + $0x5c] sm:$0xf]
        %v692 = vld [vmem:[%s3 + $0x60] sm:$0xf]
        %v693 = vld [vmem:[%s3 + $0x64] sm:$0xf]
        %v694 = vld [vmem:[%s3 + $0x68] sm:$0xf]
        %v695 = vld [vmem:[%s3 + $0x6c] sm:$0xf]
        %v696 = vld [vmem:[%s3 + $0x70] sm:$0xf]
        %v697 = vld [vmem:[%s3 + $0x74] sm:$0xf]
        %v698 = vld [vmem:[%s3 + $0x78] sm:$0xf]
        %v699 = vld [vmem:[%s3 + $0x7c] sm:$0xf]
        %v732 = vunpack.c.l.b16 %v668
        %v733 = vunpack.c.l.b16 %v669
        %v734 = vunpack.c.l.b16 %v670
        %v735 = vunpack.c.l.b16 %v671
        %v736 = vunpack.c.l.b16 %v672
        %v737 = vunpack.c.l.b16 %v673
        %v738 = vunpack.c.l.b16 %v674
        %v739 = vunpack.c.l.b16 %v675
        %v740 = vunpack.c.l.b16 %v676
        %v741 = vunpack.c.l.b16 %v677
        %v742 = vunpack.c.l.b16 %v678
        %v743 = vunpack.c.l.b16 %v679
        %v744 = vunpack.c.l.b16 %v680
        %v745 = vunpack.c.l.b16 %v681
        %v746 = vunpack.c.l.b16 %v682
        %v747 = vunpack.c.l.b16 %v683
        %v748 = vunpack.c.l.b16 %v684
        %v749 = vunpack.c.l.b16 %v685
        %v750 = vunpack.c.l.b16 %v686
        %v751 = vunpack.c.l.b16 %v687
        %v752 = vunpack.c.l.b16 %v688
        %v753 = vunpack.c.l.b16 %v689
        %v754 = vunpack.c.l.b16 %v690
        %v755 = vunpack.c.l.b16 %v691
        %v756 = vunpack.c.l.b16 %v692
        %v757 = vunpack.c.l.b16 %v693
        %v758 = vunpack.c.l.b16 %v694
        %v759 = vunpack.c.l.b16 %v695
        %v760 = vunpack.c.l.b16 %v696
        %v761 = vunpack.c.l.b16 %v697
        %v762 = vunpack.c.l.b16 %v698
        %v763 = vunpack.c.l.b16 %v699
        %v764 = vpack.c.b16 %v733, %v732
        %v765 = vpack.c.b16 %v735, %v734
        %v766 = vpack.c.b16 %v737, %v736
        %v767 = vpack.c.b16 %v739, %v738
        %v768 = vpack.c.b16 %v741, %v740
        %v769 = vpack.c.b16 %v743, %v742
        %v770 = vpack.c.b16 %v745, %v744
        %v771 = vpack.c.b16 %v747, %v746
        %v772 = vpack.c.b16 %v749, %v748
        %v773 = vpack.c.b16 %v751, %v750
        %v774 = vpack.c.b16 %v753, %v752
        %v775 = vpack.c.b16 %v755, %v754
        %v776 = vpack.c.b16 %v757, %v756
        %v777 = vpack.c.b16 %v759, %v758
        %v778 = vpack.c.b16 %v761, %v760
        %v779 = vpack.c.b16 %v763, %v762
        %796 = vmatprep.subr.bf16.mxu0 0
        %797 = vmatpush1.bf16.msra.mxu0 %v764
        %798 = vmatprep.subr.bf16.mxu0 0
        %799 = vmatpush1.bf16.msra.mxu0 %v765
        %800 = vmatprep.subr.bf16.mxu0 0
        %801 = vmatpush1.bf16.msra.mxu0 %v766
        %802 = vmatprep.subr.bf16.mxu0 0
        %803 = vmatpush1.bf16.msra.mxu0 %v767
        %804 = vmatprep.subr.bf16.mxu0 0
        %805 = vmatpush1.bf16.msra.mxu0 %v768
        %806 = vmatprep.subr.bf16.mxu0 0
        %807 = vmatpush1.bf16.msra.mxu0 %v769
        %808 = vmatprep.subr.bf16.mxu0 0
        %809 = vmatpush1.bf16.msra.mxu0 %v770
        %810 = vmatprep.subr.bf16.mxu0 0
        %811 = vmatpush1.bf16.msra.mxu0 %v771
        %812 = vmatprep.subr.bf16.mxu0 0
        %813 = vmatpush1.bf16.msra.mxu0 %v772
        %814 = vmatprep.subr.bf16.mxu0 0
        %815 = vmatpush1.bf16.msra.mxu0 %v773
        %816 = vmatprep.subr.bf16.mxu0 0
        %817 = vmatpush1.bf16.msra.mxu0 %v774
        %818 = vmatprep.subr.bf16.mxu0 0
        %819 = vmatpush1.bf16.msra.mxu0 %v775
        %820 = vmatprep.subr.bf16.mxu0 0
        %821 = vmatpush1.bf16.msra.mxu0 %v776
        %822 = vmatprep.subr.bf16.mxu0 0
        %823 = vmatpush1.bf16.msra.mxu0 %v777
        %824 = vmatprep.subr.bf16.mxu0 0
        %825 = vmatpush1.bf16.msra.mxu0 %v778
        %826 = vmatprep.subr.bf16.mxu0 0
        %827 = vmatpush1.bf16.msra.mxu0 %v779
        %828 = vmatprep.mubr.bf16.mxu0 %v667
        %829 = vmatmul.mubr.bf16.gmra.mrb[0].mxu0 %v666
        %v830 = vpop.f32.mrb[0].mxu0
        %v831 = vadd.f32 0.0, %v830
        %v832 = vpop.f32.mrb[0].mxu0
        %v833 = vpop.f32.mrb[0].mxu0
        %v834 = vadd.f32 0.0, %v833
        %v835 = vpop.f32.mrb[0].mxu0
        %836 = vdwg.mxu0
        %v837 = vpack.c.bf16 %v834, %v831
        %v838 = vld [vmem:[%s11] sm:$0x1]
        %v840 = vshrl.u32 %v838, 16
        %v841 = vpack.i.b16 %v840, %v840
        %v843 = vlaneseq
        %v844 = vshrl.u32 %v843, 7
        %v845 = vsub.s32 0, %v844
        %v846 = vrot.slane %v841, %v845
        %v847 = vadd.bf16 %v837, %v846
        %vm848 = vcmp.gt.bf16.partialorder %v847, 0
        %s849 = sshll.u32 %s509, 16
        %s850 = sor.u32 %s509, %s849
        %v851 = vstv %s850
        %v853 = vmul.bf16 %v851, %v847
        %v854 = vsel %vm848, %v847, %v853
        %v855 = vld [vmem:[%s4] sm:$0xf]
        %v856 = vld [vmem:[%s4 + $0x4] sm:$0xf]
        %v857 = vld [vmem:[%s4 + $0x8] sm:$0xf]
        %v858 = vld [vmem:[%s4 + $0xc] sm:$0xf]
        %v859 = vld [vmem:[%s4 + $0x10] sm:$0xf]
        %v860 = vld [vmem:[%s4 + $0x14] sm:$0xf]
        %v861 = vld [vmem:[%s4 + $0x18] sm:$0xf]
        %v862 = vld [vmem:[%s4 + $0x1c] sm:$0xf]
        %v863 = vld [vmem:[%s4 + $0x20] sm:$0xf]
        %v864 = vld [vmem:[%s4 + $0x24] sm:$0xf]
        %v865 = vld [vmem:[%s4 + $0x28] sm:$0xf]
        %v866 = vld [vmem:[%s4 + $0x2c] sm:$0xf]
        %v867 = vld [vmem:[%s4 + $0x30] sm:$0xf]
        %v868 = vld [vmem:[%s4 + $0x34] sm:$0xf]
        %v869 = vld [vmem:[%s4 + $0x38] sm:$0xf]
        %v870 = vld [vmem:[%s4 + $0x3c] sm:$0xf]
        %v887 = vunpack.c.l.b16 %v855
        %v888 = vunpack.c.l.b16 %v856
        %v889 = vunpack.c.l.b16 %v857
        %v890 = vunpack.c.l.b16 %v858
        %v891 = vunpack.c.l.b16 %v859
        %v892 = vunpack.c.l.b16 %v860
        %v893 = vunpack.c.l.b16 %v861
        %v894 = vunpack.c.l.b16 %v862
        %v895 = vunpack.c.l.b16 %v863
        %v896 = vunpack.c.l.b16 %v864
        %v897 = vunpack.c.l.b16 %v865
        %v898 = vunpack.c.l.b16 %v866
        %v899 = vunpack.c.l.b16 %v867
        %v900 = vunpack.c.l.b16 %v868
        %v901 = vunpack.c.l.b16 %v869
        %v902 = vunpack.c.l.b16 %v870
        %v903 = vpack.c.b16 %v888, %v887
        %v904 = vpack.c.b16 %v890, %v889
        %v905 = vpack.c.b16 %v892, %v891
        %v906 = vpack.c.b16 %v894, %v893
        %v907 = vpack.c.b16 %v896, %v895
        %v908 = vpack.c.b16 %v898, %v897
        %v909 = vpack.c.b16 %v900, %v899
        %v910 = vpack.c.b16 %v902, %v901
        %919 = vmatprep.subr.bf16.mxu0 0
        %920 = vmatpush1.bf16.msra.mxu0 %v903
        %921 = vmatprep.subr.bf16.mxu0 0
        %922 = vmatpush1.bf16.msra.mxu0 %v904
        %923 = vmatprep.subr.bf16.mxu0 0
        %924 = vmatpush1.bf16.msra.mxu0 %v905
        %925 = vmatprep.subr.bf16.mxu0 0
        %926 = vmatpush1.bf16.msra.mxu0 %v906
        %927 = vmatprep.subr.bf16.mxu0 0
        %928 = vmatpush1.bf16.msra.mxu0 %v907
        %929 = vmatprep.subr.bf16.mxu0 0
        %930 = vmatpush1.bf16.msra.mxu0 %v908
        %931 = vmatprep.subr.bf16.mxu0 0
        %932 = vmatpush1.bf16.msra.mxu0 %v909
        %933 = vmatprep.subr.bf16.mxu0 0
        %934 = vmatpush1.bf16.msra.mxu0 %v910
        %935 = vmatprep.subr.bf16.mxu0 0
        %936 = vmatpush1.bf16.msra.mxu0 0
        %937 = vmatprep.subr.bf16.mxu0 0
        %938 = vmatpush1.bf16.msra.mxu0 0
        %939 = vmatprep.subr.bf16.mxu0 0
        %940 = vmatpush1.bf16.msra.mxu0 0
        %941 = vmatprep.subr.bf16.mxu0 0
        %942 = vmatpush1.bf16.msra.mxu0 0
        %943 = vmatprep.subr.bf16.mxu0 0
        %944 = vmatpush1.bf16.msra.mxu0 0
        %945 = vmatprep.subr.bf16.mxu0 0
        %946 = vmatpush1.bf16.msra.mxu0 0
        %947 = vmatprep.subr.bf16.mxu0 0
        %948 = vmatpush1.bf16.msra.mxu0 0
        %949 = vmatprep.subr.bf16.mxu0 0
        %950 = vmatpush1.bf16.msra.mxu0 0
        %951 = vmatprep.mubr.bf16.mxu0 0
        %952 = vmatmul.mubr.bf16.gmra.mrb[0].mxu0 %v854
        %v953 = vpop.f32.mrb[0].mxu0
        %v954 = vadd.f32 0.0, %v953
        %v955 = vpop.f32.mrb[0].mxu0
        %v956 = vpop.f32.mrb[0].mxu0
        %v957 = vadd.f32 0.0, %v956
        %v958 = vpop.f32.mrb[0].mxu0
        %959 = vdwg.mxu0
        %v960 = vpack.c.bf16 %v957, %v954
        %v961 = vld [vmem:[%s11] sm:$0x2]
        %v963 = vpack.i.b16 %v961, %v961
        %v965 = vlaneseq
        %v966 = vshrl.u32 %v965, 7
        %v967 = vsub.s32 1, %v966
        %v968 = vrot.slane %v963, %v967
        %v969 = vadd.bf16 %v960, %v968
        %v970 = vld [vmem:[#allocation9] sm:$0xff]
        %v971 = vld [vmem:[#allocation9 + $0x8] sm:$0xff]
        %v972 = vld [vmem:[#allocation9 + $0x10] sm:$0xff]
        %v973 = vld [vmem:[#allocation9 + $0x18] sm:$0xff]
        %v974 = vld [vmem:[%s6] sm:$0xff]
        %v975 = vld [vmem:[%s6 + $0x8] sm:$0xff]
        %v976 = vld [vmem:[%s6 + $0x10] sm:$0xff]
        %v977 = vld [vmem:[%s6 + $0x18] sm:$0xff]
        %v978 = vld [vmem:[%s6 + $0x20] sm:$0xff]
        %v979 = vld [vmem:[%s6 + $0x28] sm:$0xff]
        %v980 = vld [vmem:[%s6 + $0x30] sm:$0xff]
        %v981 = vld [vmem:[%s6 + $0x38] sm:$0xff]
        %v990 = vunpack.c.l.b16 %v974
        %v991 = vunpack.c.h.b16 %v974
        %v992 = vunpack.c.l.b16 %v975
        %v993 = vunpack.c.h.b16 %v975
        %v994 = vunpack.c.l.b16 %v976
        %v995 = vunpack.c.h.b16 %v976
        %v996 = vunpack.c.l.b16 %v977
        %v997 = vunpack.c.h.b16 %v977
        %v998 = vunpack.c.l.b16 %v978
        %v999 = vunpack.c.h.b16 %v978
        %v1000 = vunpack.c.l.b16 %v979
        %v1001 = vunpack.c.h.b16 %v979
        %v1002 = vunpack.c.l.b16 %v980
        %v1003 = vunpack.c.h.b16 %v980
        %v1004 = vunpack.c.l.b16 %v981
        %v1005 = vunpack.c.h.b16 %v981
        %v1006 = vpack.c.b16 %v994, %v990
        %v1007 = vpack.c.b16 %v995, %v991
        %v1008 = vpack.c.b16 %v996, %v992
        %v1009 = vpack.c.b16 %v997, %v993
        %v1010 = vpack.c.b16 %v1002, %v998
        %v1011 = vpack.c.b16 %v1003, %v999
        %v1012 = vpack.c.b16 %v1004, %v1000
        %v1013 = vpack.c.b16 %v1005, %v1001
        %v1023 = vsel %vm587, %v969, 0
        %1025 = vmatprep.subr.bf16.mxu0 %v1007
        %1026 = vmatpush1.bf16.msra.mxu0 %v1006
        %1027 = vmatprep.subr.bf16.mxu0 %v1011
        %1028 = vmatpush1.bf16.msra.mxu0 %v1010
        %1029 = vmatprep.subr.bf16.mxu0 0
        %1030 = vmatpush1.bf16.msra.mxu0 0
        %1031 = vmatprep.subr.bf16.mxu0 0
        %1032 = vmatpush1.bf16.msra.mxu0 0
        %1033 = vmatprep.subr.bf16.mxu0 0
        %1034 = vmatpush1.bf16.msra.mxu0 0
        %1035 = vmatprep.subr.bf16.mxu0 0
        %1036 = vmatpush1.bf16.msra.mxu0 0
        %1037 = vmatprep.subr.bf16.mxu0 0
        %1038 = vmatpush1.bf16.msra.mxu0 0
        %1039 = vmatprep.subr.bf16.mxu0 0
        %1040 = vmatpush1.bf16.msra.mxu0 0
        %1041 = vmatprep.subr.bf16.mxu0 0
        %1042 = vmatpush1.bf16.msra.mxu0 0
        %1043 = vmatprep.subr.bf16.mxu0 0
        %1044 = vmatpush1.bf16.msra.mxu0 0
        %1045 = vmatprep.subr.bf16.mxu0 0
        %1046 = vmatpush1.bf16.msra.mxu0 0
        %1047 = vmatprep.subr.bf16.mxu0 0
        %1048 = vmatpush1.bf16.msra.mxu0 0
        %1049 = vmatprep.subr.bf16.mxu0 0
        %1050 = vmatpush1.bf16.msra.mxu0 0
        %1051 = vmatprep.subr.bf16.mxu0 0
        %1052 = vmatpush1.bf16.msra.mxu0 0
        %1053 = vmatprep.subr.bf16.mxu0 0
        %1054 = vmatpush1.bf16.msra.mxu0 0
        %1055 = vmatprep.subr.bf16.mxu0 0
        %1056 = vmatpush1.bf16.msra.mxu0 0
        %1057 = vmatprep.mubr.bf16.mxu0 0
        %1058 = vmatmul.mubr.bf16.gmra.mrb[0].mxu0 %v1023
        %v1059 = vpop.f32.mrb[0].mxu0
        %v1060 = vadd.f32 0.0, %v1059
        %v1061 = vpop.f32.mrb[0].mxu0
        %v1062 = vadd.f32 0.0, %v1061
        %v1063 = vpop.f32.mrb[0].mxu0
        %v1064 = vadd.f32 0.0, %v1063
        %v1065 = vpop.f32.mrb[0].mxu0
        %v1066 = vadd.f32 0.0, %v1065
        %1067 = vdwg.mxu0
        %1068 = vmatprep.subr.bf16.mxu0 %v1009
        %1069 = vmatpush1.bf16.msra.mxu0 %v1008
        %1070 = vmatprep.subr.bf16.mxu0 %v1013
        %1071 = vmatpush1.bf16.msra.mxu0 %v1012
        %1072 = vmatprep.subr.bf16.mxu0 0
        %1073 = vmatpush1.bf16.msra.mxu0 0
        %1074 = vmatprep.subr.bf16.mxu0 0
        %1075 = vmatpush1.bf16.msra.mxu0 0
        %1076 = vmatprep.subr.bf16.mxu0 0
        %1077 = vmatpush1.bf16.msra.mxu0 0
        %1078 = vmatprep.subr.bf16.mxu0 0
        %1079 = vmatpush1.bf16.msra.mxu0 0
        %1080 = vmatprep.subr.bf16.mxu0 0
        %1081 = vmatpush1.bf16.msra.mxu0 0
        %1082 = vmatprep.subr.bf16.mxu0 0
        %1083 = vmatpush1.bf16.msra.mxu0 0
        %1084 = vmatprep.subr.bf16.mxu0 0
        %1085 = vmatpush1.bf16.msra.mxu0 0
        %1086 = vmatprep.subr.bf16.mxu0 0
        %1087 = vmatpush1.bf16.msra.mxu0 0
        %1088 = vmatprep.subr.bf16.mxu0 0
        %1089 = vmatpush1.bf16.msra.mxu0 0
        %1090 = vmatprep.subr.bf16.mxu0 0
        %1091 = vmatpush1.bf16.msra.mxu0 0
        %1092 = vmatprep.subr.bf16.mxu0 0
        %1093 = vmatpush1.bf16.msra.mxu0 0
        %1094 = vmatprep.subr.bf16.mxu0 0
        %1095 = vmatpush1.bf16.msra.mxu0 0
        %1096 = vmatprep.subr.bf16.mxu0 0
        %1097 = vmatpush1.bf16.msra.mxu0 0
        %1098 = vmatprep.subr.bf16.mxu0 0
        %1099 = vmatpush1.bf16.msra.mxu0 0
        %1100 = vmatprep.mubr.bf16.mxu0 0
        %1101 = vmatmul.mubr.bf16.gmra.mrb[0].mxu0 %v1023
        %v1102 = vpop.f32.mrb[0].mxu0
        %v1103 = vadd.f32 0.0, %v1102
        %v1104 = vpop.f32.mrb[0].mxu0
        %v1105 = vadd.f32 0.0, %v1104
        %v1106 = vpop.f32.mrb[0].mxu0
        %v1107 = vadd.f32 0.0, %v1106
        %v1108 = vpop.f32.mrb[0].mxu0
        %v1109 = vadd.f32 0.0, %v1108
        %1110 = vdwg.mxu0
        %v1115 = vunpack.c.l.b16 %v970
        %v1116 = vunpack.c.h.b16 %v970
        %v1117 = vunpack.c.l.b16 %v971
        %v1118 = vunpack.c.h.b16 %v971
        %v1119 = vunpack.c.l.b16 %v972
        %v1120 = vunpack.c.h.b16 %v972
        %v1121 = vunpack.c.l.b16 %v973
        %v1122 = vunpack.c.h.b16 %v973
        %v1123 = vpack.c.b16 %v1119, %v1115
        %v1124 = vpack.c.b16 %v1120, %v1116
        %v1125 = vpack.c.b16 %v1121, %v1117
        %v1126 = vpack.c.b16 %v1122, %v1118
        %vm1131 = vcmask 130048
        %v1133 = vsel %vm1131, %v564, 0
        %1135 = vmatprep.subr.bf16.mxu0 %v1124
        %1136 = vmatpush1.bf16.msra.mxu0 %v1123
        %1137 = vmatprep.subr.bf16.mxu0 0
        %1138 = vmatpush1.bf16.msra.mxu0 0
        %1139 = vmatprep.subr.bf16.mxu0 0
        %1140 = vmatpush1.bf16.msra.mxu0 0
        %1141 = vmatprep.subr.bf16.mxu0 0
        %1142 = vmatpush1.bf16.msra.mxu0 0
        %1143 = vmatprep.subr.bf16.mxu0 0
        %1144 = vmatpush1.bf16.msra.mxu0 0
        %1145 = vmatprep.subr.bf16.mxu0 0
        %1146 = vmatpush1.bf16.msra.mxu0 0
        %1147 = vmatprep.subr.bf16.mxu0 0
        %1148 = vmatpush1.bf16.msra.mxu0 0
        %1149 = vmatprep.subr.bf16.mxu0 0
        %1150 = vmatpush1.bf16.msra.mxu0 0
        %1151 = vmatprep.subr.bf16.mxu0 0
        %1152 = vmatpush1.bf16.msra.mxu0 0
        %1153 = vmatprep.subr.bf16.mxu0 0
        %1154 = vmatpush1.bf16.msra.mxu0 0
        %1155 = vmatprep.subr.bf16.mxu0 0
        %1156 = vmatpush1.bf16.msra.mxu0 0
        %1157 = vmatprep.subr.bf16.mxu0 0
        %1158 = vmatpush1.bf16.msra.mxu0 0
        %1159 = vmatprep.subr.bf16.mxu0 0
        %1160 = vmatpush1.bf16.msra.mxu0 0
        %1161 = vmatprep.subr.bf16.mxu0 0
        %1162 = vmatpush1.bf16.msra.mxu0 0
        %1163 = vmatprep.subr.bf16.mxu0 0
        %1164 = vmatpush1.bf16.msra.mxu0 0
        %1165 = vmatprep.subr.bf16.mxu0 0
        %1166 = vmatpush1.bf16.msra.mxu0 0
        %1167 = vmatprep.mubr.bf16.mxu0 0
        %1168 = vmatmul.mubr.bf16.gmra.mrb[0].mxu0 %v1133
        %v1169 = vpop.f32.mrb[0].mxu0
        %v1170 = vadd.f32 %v1060, %v1169
        %v1171 = vpop.f32.mrb[0].mxu0
        %v1172 = vadd.f32 %v1062, %v1171
        %v1173 = vpop.f32.mrb[0].mxu0
        %v1174 = vadd.f32 %v1064, %v1173
        %v1175 = vpop.f32.mrb[0].mxu0
        %v1176 = vadd.f32 %v1066, %v1175
        %1177 = vdwg.mxu0
        %1178 = vmatprep.subr.bf16.mxu0 %v1126
        %1179 = vmatpush1.bf16.msra.mxu0 %v1125
        %1180 = vmatprep.subr.bf16.mxu0 0
        %1181 = vmatpush1.bf16.msra.mxu0 0
        %1182 = vmatprep.subr.bf16.mxu0 0
        %1183 = vmatpush1.bf16.msra.mxu0 0
        %1184 = vmatprep.subr.bf16.mxu0 0
        %1185 = vmatpush1.bf16.msra.mxu0 0
        %1186 = vmatprep.subr.bf16.mxu0 0
        %1187 = vmatpush1.bf16.msra.mxu0 0
        %1188 = vmatprep.subr.bf16.mxu0 0
        %1189 = vmatpush1.bf16.msra.mxu0 0
        %1190 = vmatprep.subr.bf16.mxu0 0
        %1191 = vmatpush1.bf16.msra.mxu0 0
        %1192 = vmatprep.subr.bf16.mxu0 0
        %1193 = vmatpush1.bf16.msra.mxu0 0
        %1194 = vmatprep.subr.bf16.mxu0 0
        %1195 = vmatpush1.bf16.msra.mxu0 0
        %1196 = vmatprep.subr.bf16.mxu0 0
        %1197 = vmatpush1.bf16.msra.mxu0 0
        %1198 = vmatprep.subr.bf16.mxu0 0
        %1199 = vmatpush1.bf16.msra.mxu0 0
        %1200 = vmatprep.subr.bf16.mxu0 0
        %1201 = vmatpush1.bf16.msra.mxu0 0
        %1202 = vmatprep.subr.bf16.mxu0 0
        %1203 = vmatpush1.bf16.msra.mxu0 0
        %1204 = vmatprep.subr.bf16.mxu0 0
        %1205 = vmatpush1.bf16.msra.mxu0 0
        %1206 = vmatprep.subr.bf16.mxu0 0
        %1207 = vmatpush1.bf16.msra.mxu0 0
        %1208 = vmatprep.subr.bf16.mxu0 0
        %1209 = vmatpush1.bf16.msra.mxu0 0
        %1210 = vmatprep.mubr.bf16.mxu0 0
        %1211 = vmatmul.mubr.bf16.gmra.mrb[0].mxu0 %v1133
        %v1212 = vpop.f32.mrb[0].mxu0
        %v1213 = vadd.f32 %v1103, %v1212
        %v1214 = vpop.f32.mrb[0].mxu0
        %v1215 = vadd.f32 %v1105, %v1214
        %v1216 = vpop.f32.mrb[0].mxu0
        %v1217 = vadd.f32 %v1107, %v1216
        %v1218 = vpop.f32.mrb[0].mxu0
        %v1219 = vadd.f32 %v1109, %v1218
        %1220 = vdwg.mxu0
        %v1221 = vpack.c.bf16 %v1174, %v1170
        %v1222 = vpack.c.bf16 %v1176, %v1172
        %v1223 = vpack.c.bf16 %v1217, %v1213
        %v1224 = vpack.c.bf16 %v1219, %v1215
        %v1225 = vld [vmem:[%s11] sm:$0x22]
        %v1226 = vld [vmem:[%s11 + $0x8] sm:$0x22]
        %v1229 = vunpack.c.l.b16 %v1225
        %v1230 = vunpack.c.h.b16 %v1225
        %v1231 = vunpack.c.l.b16 %v1226
        %v1232 = vunpack.c.h.b16 %v1226
        %v1233 = vpack.c.b16 %v1229, %v1229
        %v1234 = vpack.c.b16 %v1230, %v1230
        %v1235 = vpack.c.b16 %v1231, %v1231
        %v1236 = vpack.c.b16 %v1232, %v1232
        %v1238 = vshrl.u32 %v1233, 16
        %v1239 = vpack.i.b16 %v1238, %v1238
        %v1241 = vlaneseq
        %v1242 = vshrl.u32 %v1241, 7
        %v1243 = vsub.s32 1, %v1242
        %v1244 = vrot.slane %v1239, %v1243
        %v1246 = vshrl.u32 %v1234, 16
        %v1247 = vpack.i.b16 %v1246, %v1246
        %v1249 = vlaneseq
        %v1250 = vshrl.u32 %v1249, 7
        %v1251 = vsub.s32 1, %v1250
        %v1252 = vrot.slane %v1247, %v1251
        %v1254 = vshrl.u32 %v1235, 16
        %v1255 = vpack.i.b16 %v1254, %v1254
        %v1257 = vlaneseq
        %v1258 = vshrl.u32 %v1257, 7
        %v1259 = vsub.s32 1, %v1258
        %v1260 = vrot.slane %v1255, %v1259
        %v1262 = vshrl.u32 %v1236, 16
        %v1263 = vpack.i.b16 %v1262, %v1262
        %v1265 = vlaneseq
        %v1266 = vshrl.u32 %v1265, 7
        %v1267 = vsub.s32 1, %v1266
        %v1268 = vrot.slane %v1263, %v1267
        %v1269 = vadd.bf16 %v1221, %v1244
        %v1270 = vadd.bf16 %v1222, %v1252
        %v1271 = vadd.bf16 %v1223, %v1260
        %v1272 = vadd.bf16 %v1224, %v1268
        %vm1273 = vcmp.gt.bf16.partialorder %v1269, 0
        %vm1274 = vcmp.gt.bf16.partialorder %v1270, 0
        %vm1275 = vcmp.gt.bf16.partialorder %v1271, 0
        %vm1276 = vcmp.gt.bf16.partialorder %v1272, 0
        %s1277 = sshll.u32 %s520, 16
        %s1278 = sor.u32 %s520, %s1277
        %v1279 = vstv %s1278
        %v1281 = vmul.bf16 %v1279, %v1269
        %v1282 = vmul.bf16 %v1279, %v1270
        %v1283 = vmul.bf16 %v1279, %v1271
        %v1284 = vmul.bf16 %v1279, %v1272
        %v1285 = vsel %vm1273, %v1269, %v1281
        %v1286 = vsel %vm1274, %v1270, %v1282
        %v1287 = vsel %vm1275, %v1271, %v1283
        %v1288 = vsel %vm1276, %v1272, %v1284
        %v1289 = vld [vmem:[#allocation10] sm:$0xff]
        %v1290 = vld [vmem:[#allocation10 + $0x8] sm:$0xff]
        %v1291 = vld [vmem:[#allocation10 + $0x10] sm:$0xff]
        %v1292 = vld [vmem:[#allocation10 + $0x18] sm:$0xff]
        %v1293 = vld [vmem:[#allocation10 + $0x20] sm:$0xff]
        %v1294 = vld [vmem:[#allocation10 + $0x28] sm:$0xff]
        %v1295 = vld [vmem:[#allocation10 + $0x30] sm:$0xff]
        %v1296 = vld [vmem:[#allocation10 + $0x38] sm:$0xff]
        %v1297 = vld [vmem:[#allocation10 + $0x40] sm:$0xff]
        %v1298 = vld [vmem:[#allocation10 + $0x48] sm:$0xff]
        %v1299 = vld [vmem:[#allocation10 + $0x50] sm:$0xff]
        %v1300 = vld [vmem:[#allocation10 + $0x58] sm:$0xff]
        %v1301 = vld [vmem:[#allocation10 + $0x60] sm:$0xff]
        %v1302 = vld [vmem:[#allocation10 + $0x68] sm:$0xff]
        %v1303 = vld [vmem:[#allocation10 + $0x70] sm:$0xff]
        %v1304 = vld [vmem:[#allocation10 + $0x78] sm:$0xff]
        %v1305 = vld [vmem:[#allocation10 + $0x80] sm:$0xff]
        %v1306 = vld [vmem:[#allocation10 + $0x88] sm:$0xff]
        %v1307 = vld [vmem:[#allocation10 + $0x90] sm:$0xff]
        %v1308 = vld [vmem:[#allocation10 + $0x98] sm:$0xff]
        %v1309 = vld [vmem:[#allocation10 + $0xa0] sm:$0xff]
        %v1310 = vld [vmem:[#allocation10 + $0xa8] sm:$0xff]
        %v1311 = vld [vmem:[#allocation10 + $0xb0] sm:$0xff]
        %v1312 = vld [vmem:[#allocation10 + $0xb8] sm:$0xff]
        %v1313 = vld [vmem:[#allocation10 + $0xc0] sm:$0xff]
        %v1314 = vld [vmem:[#allocation10 + $0xc8] sm:$0xff]
        %v1315 = vld [vmem:[#allocation10 + $0xd0] sm:$0xff]
        %v1316 = vld [vmem:[#allocation10 + $0xd8] sm:$0xff]
        %v1317 = vld [vmem:[#allocation10 + $0xe0] sm:$0xff]
        %v1318 = vld [vmem:[#allocation10 + $0xe8] sm:$0xff]
        %v1319 = vld [vmem:[#allocation10 + $0xf0] sm:$0xff]
        %v1320 = vld [vmem:[#allocation10 + $0xf8] sm:$0xff]
        %v1321 = vld [vmem:[#allocation10 + $0x100] sm:$0xff]
        %v1322 = vld [vmem:[#allocation10 + $0x108] sm:$0xff]
        %v1323 = vld [vmem:[#allocation10 + $0x110] sm:$0xff]
        %v1324 = vld [vmem:[#allocation10 + $0x118] sm:$0xff]
        %v1325 = vld [vmem:[#allocation10 + $0x120] sm:$0xff]
        %v1326 = vld [vmem:[#allocation10 + $0x128] sm:$0xff]
        %v1327 = vld [vmem:[#allocation10 + $0x130] sm:$0xff]
        %v1328 = vld [vmem:[#allocation10 + $0x138] sm:$0xff]
        %v1329 = vld [vmem:[#allocation10 + $0x140] sm:$0xff]
        %v1330 = vld [vmem:[#allocation10 + $0x148] sm:$0xff]
        %v1331 = vld [vmem:[#allocation10 + $0x150] sm:$0xff]
        %v1332 = vld [vmem:[#allocation10 + $0x158] sm:$0xff]
        %v1333 = vld [vmem:[#allocation10 + $0x160] sm:$0xff]
        %v1334 = vld [vmem:[#allocation10 + $0x168] sm:$0xff]
        %v1335 = vld [vmem:[#allocation10 + $0x170] sm:$0xff]
        %v1336 = vld [vmem:[#allocation10 + $0x178] sm:$0xff]
        %v1337 = vld [vmem:[#allocation10 + $0x180] sm:$0xff]
        %v1338 = vld [vmem:[#allocation10 + $0x188] sm:$0xff]
        %v1339 = vld [vmem:[#allocation10 + $0x190] sm:$0xff]
        %v1340 = vld [vmem:[#allocation10 + $0x198] sm:$0xff]
        %v1341 = vld [vmem:[#allocation10 + $0x1a0] sm:$0xff]
        %v1342 = vld [vmem:[#allocation10 + $0x1a8] sm:$0xff]
        %v1343 = vld [vmem:[#allocation10 + $0x1b0] sm:$0xff]
        %v1344 = vld [vmem:[#allocation10 + $0x1b8] sm:$0xff]
        %v1345 = vld [vmem:[#allocation10 + $0x1c0] sm:$0xff]
        %v1346 = vld [vmem:[#allocation10 + $0x1c8] sm:$0xff]
        %v1347 = vld [vmem:[#allocation10 + $0x1d0] sm:$0xff]
        %v1348 = vld [vmem:[#allocation10 + $0x1d8] sm:$0xff]
        %v1349 = vld [vmem:[#allocation10 + $0x1e0] sm:$0xff]
        %v1350 = vld [vmem:[#allocation10 + $0x1e8] sm:$0xff]
        %v1351 = vld [vmem:[#allocation10 + $0x1f0] sm:$0xff]
        %v1352 = vld [vmem:[#allocation10 + $0x1f8] sm:$0xff]
        %v1417 = vunpack.c.l.b16 %v1289
        %v1418 = vunpack.c.h.b16 %v1289
        %v1419 = vunpack.c.l.b16 %v1290
        %v1420 = vunpack.c.h.b16 %v1290
        %v1421 = vunpack.c.l.b16 %v1291
        %v1422 = vunpack.c.h.b16 %v1291
        %v1423 = vunpack.c.l.b16 %v1292
        %v1424 = vunpack.c.h.b16 %v1292
        %v1425 = vunpack.c.l.b16 %v1293
        %v1426 = vunpack.c.h.b16 %v1293
        %v1427 = vunpack.c.l.b16 %v1294
        %v1428 = vunpack.c.h.b16 %v1294
        %v1429 = vunpack.c.l.b16 %v1295
        %v1430 = vunpack.c.h.b16 %v1295
        %v1431 = vunpack.c.l.b16 %v1296
        %v1432 = vunpack.c.h.b16 %v1296
        %v1433 = vunpack.c.l.b16 %v1297
        %v1434 = vunpack.c.h.b16 %v1297
        %v1435 = vunpack.c.l.b16 %v1298
        %v1436 = vunpack.c.h.b16 %v1298
        %v1437 = vunpack.c.l.b16 %v1299
        %v1438 = vunpack.c.h.b16 %v1299
        %v1439 = vunpack.c.l.b16 %v1300
        %v1440 = vunpack.c.h.b16 %v1300
        %v1441 = vunpack.c.l.b16 %v1301
        %v1442 = vunpack.c.h.b16 %v1301
        %v1443 = vunpack.c.l.b16 %v1302
        %v1444 = vunpack.c.h.b16 %v1302
        %v1445 = vunpack.c.l.b16 %v1303
        %v1446 = vunpack.c.h.b16 %v1303
        %v1447 = vunpack.c.l.b16 %v1304
        %v1448 = vunpack.c.h.b16 %v1304
        %v1449 = vunpack.c.l.b16 %v1305
        %v1450 = vunpack.c.h.b16 %v1305
        %v1451 = vunpack.c.l.b16 %v1306
        %v1452 = vunpack.c.h.b16 %v1306
        %v1453 = vunpack.c.l.b16 %v1307
        %v1454 = vunpack.c.h.b16 %v1307
        %v1455 = vunpack.c.l.b16 %v1308
        %v1456 = vunpack.c.h.b16 %v1308
        %v1457 = vunpack.c.l.b16 %v1309
        %v1458 = vunpack.c.h.b16 %v1309
        %v1459 = vunpack.c.l.b16 %v1310
        %v1460 = vunpack.c.h.b16 %v1310
        %v1461 = vunpack.c.l.b16 %v1311
        %v1462 = vunpack.c.h.b16 %v1311
        %v1463 = vunpack.c.l.b16 %v1312
        %v1464 = vunpack.c.h.b16 %v1312
        %v1465 = vunpack.c.l.b16 %v1313
        %v1466 = vunpack.c.h.b16 %v1313
        %v1467 = vunpack.c.l.b16 %v1314
        %v1468 = vunpack.c.h.b16 %v1314
        %v1469 = vunpack.c.l.b16 %v1315
        %v1470 = vunpack.c.h.b16 %v1315
        %v1471 = vunpack.c.l.b16 %v1316
        %v1472 = vunpack.c.h.b16 %v1316
        %v1473 = vunpack.c.l.b16 %v1317
        %v1474 = vunpack.c.h.b16 %v1317
        %v1475 = vunpack.c.l.b16 %v1318
        %v1476 = vunpack.c.h.b16 %v1318
        %v1477 = vunpack.c.l.b16 %v1319
        %v1478 = vunpack.c.h.b16 %v1319
        %v1479 = vunpack.c.l.b16 %v1320
        %v1480 = vunpack.c.h.b16 %v1320
        %v1481 = vunpack.c.l.b16 %v1321
        %v1482 = vunpack.c.h.b16 %v1321
        %v1483 = vunpack.c.l.b16 %v1322
        %v1484 = vunpack.c.h.b16 %v1322
        %v1485 = vunpack.c.l.b16 %v1323
        %v1486 = vunpack.c.h.b16 %v1323
        %v1487 = vunpack.c.l.b16 %v1324
        %v1488 = vunpack.c.h.b16 %v1324
        %v1489 = vunpack.c.l.b16 %v1325
        %v1490 = vunpack.c.h.b16 %v1325
        %v1491 = vunpack.c.l.b16 %v1326
        %v1492 = vunpack.c.h.b16 %v1326
        %v1493 = vunpack.c.l.b16 %v1327
        %v1494 = vunpack.c.h.b16 %v1327
        %v1495 = vunpack.c.l.b16 %v1328
        %v1496 = vunpack.c.h.b16 %v1328
        %v1497 = vunpack.c.l.b16 %v1329
        %v1498 = vunpack.c.h.b16 %v1329
        %v1499 = vunpack.c.l.b16 %v1330
        %v1500 = vunpack.c.h.b16 %v1330
        %v1501 = vunpack.c.l.b16 %v1331
        %v1502 = vunpack.c.h.b16 %v1331
        %v1503 = vunpack.c.l.b16 %v1332
        %v1504 = vunpack.c.h.b16 %v1332
        %v1505 = vunpack.c.l.b16 %v1333
        %v1506 = vunpack.c.h.b16 %v1333
        %v1507 = vunpack.c.l.b16 %v1334
        %v1508 = vunpack.c.h.b16 %v1334
        %v1509 = vunpack.c.l.b16 %v1335
        %v1510 = vunpack.c.h.b16 %v1335
        %v1511 = vunpack.c.l.b16 %v1336
        %v1512 = vunpack.c.h.b16 %v1336
        %v1513 = vunpack.c.l.b16 %v1337
        %v1514 = vunpack.c.h.b16 %v1337
        %v1515 = vunpack.c.l.b16 %v1338
        %v1516 = vunpack.c.h.b16 %v1338
        %v1517 = vunpack.c.l.b16 %v1339
        %v1518 = vunpack.c.h.b16 %v1339
        %v1519 = vunpack.c.l.b16 %v1340
        %v1520 = vunpack.c.h.b16 %v1340
        %v1521 = vunpack.c.l.b16 %v1341
        %v1522 = vunpack.c.h.b16 %v1341
        %v1523 = vunpack.c.l.b16 %v1342
        %v1524 = vunpack.c.h.b16 %v1342
        %v1525 = vunpack.c.l.b16 %v1343
        %v1526 = vunpack.c.h.b16 %v1343
        %v1527 = vunpack.c.l.b16 %v1344
        %v1528 = vunpack.c.h.b16 %v1344
        %v1529 = vunpack.c.l.b16 %v1345
        %v1530 = vunpack.c.h.b16 %v1345
        %v1531 = vunpack.c.l.b16 %v1346
        %v1532 = vunpack.c.h.b16 %v1346
        %v1533 = vunpack.c.l.b16 %v1347
        %v1534 = vunpack.c.h.b16 %v1347
        %v1535 = vunpack.c.l.b16 %v1348
        %v1536 = vunpack.c.h.b16 %v1348
        %v1537 = vunpack.c.l.b16 %v1349
        %v1538 = vunpack.c.h.b16 %v1349
        %v1539 = vunpack.c.l.b16 %v1350
        %v1540 = vunpack.c.h.b16 %v1350
        %v1541 = vunpack.c.l.b16 %v1351
        %v1542 = vunpack.c.h.b16 %v1351
        %v1543 = vunpack.c.l.b16 %v1352
        %v1544 = vunpack.c.h.b16 %v1352
        %v1545 = vpack.c.b16 %v1419, %v1417
        %v1546 = vpack.c.b16 %v1420, %v1418
        %v1547 = vpack.c.b16 %v1423, %v1421
        %v1548 = vpack.c.b16 %v1424, %v1422
        %v1549 = vpack.c.b16 %v1427, %v1425
        %v1550 = vpack.c.b16 %v1428, %v1426
        %v1551 = vpack.c.b16 %v1431, %v1429
        %v1552 = vpack.c.b16 %v1432, %v1430
        %v1553 = vpack.c.b16 %v1435, %v1433
        %v1554 = vpack.c.b16 %v1436, %v1434
        %v1555 = vpack.c.b16 %v1439, %v1437
        %v1556 = vpack.c.b16 %v1440, %v1438
        %v1557 = vpack.c.b16 %v1443, %v1441
        %v1558 = vpack.c.b16 %v1444, %v1442
        %v1559 = vpack.c.b16 %v1447, %v1445
        %v1560 = vpack.c.b16 %v1448, %v1446
        %v1561 = vpack.c.b16 %v1451, %v1449
        %v1562 = vpack.c.b16 %v1452, %v1450
        %v1563 = vpack.c.b16 %v1455, %v1453
        %v1564 = vpack.c.b16 %v1456, %v1454
        %v1565 = vpack.c.b16 %v1459, %v1457
        %v1566 = vpack.c.b16 %v1460, %v1458
        %v1567 = vpack.c.b16 %v1463, %v1461
        %v1568 = vpack.c.b16 %v1464, %v1462
        %v1569 = vpack.c.b16 %v1467, %v1465
        %v1570 = vpack.c.b16 %v1468, %v1466
        %v1571 = vpack.c.b16 %v1471, %v1469
        %v1572 = vpack.c.b16 %v1472, %v1470
        %v1573 = vpack.c.b16 %v1475, %v1473
        %v1574 = vpack.c.b16 %v1476, %v1474
        %v1575 = vpack.c.b16 %v1479, %v1477
        %v1576 = vpack.c.b16 %v1480, %v1478
        %v1577 = vpack.c.b16 %v1483, %v1481
        %v1578 = vpack.c.b16 %v1484, %v1482
        %v1579 = vpack.c.b16 %v1487, %v1485
        %v1580 = vpack.c.b16 %v1488, %v1486
        %v1581 = vpack.c.b16 %v1491, %v1489
        %v1582 = vpack.c.b16 %v1492, %v1490
        %v1583 = vpack.c.b16 %v1495, %v1493
        %v1584 = vpack.c.b16 %v1496, %v1494
        %v1585 = vpack.c.b16 %v1499, %v1497
        %v1586 = vpack.c.b16 %v1500, %v1498
        %v1587 = vpack.c.b16 %v1503, %v1501
        %v1588 = vpack.c.b16 %v1504, %v1502
        %v1589 = vpack.c.b16 %v1507, %v1505
        %v1590 = vpack.c.b16 %v1508, %v1506
        %v1591 = vpack.c.b16 %v1511, %v1509
        %v1592 = vpack.c.b16 %v1512, %v1510
        %v1593 = vpack.c.b16 %v1515, %v1513
        %v1594 = vpack.c.b16 %v1516, %v1514
        %v1595 = vpack.c.b16 %v1519, %v1517
        %v1596 = vpack.c.b16 %v1520, %v1518
        %v1597 = vpack.c.b16 %v1523, %v1521
        %v1598 = vpack.c.b16 %v1524, %v1522
        %v1599 = vpack.c.b16 %v1527, %v1525
        %v1600 = vpack.c.b16 %v1528, %v1526
        %v1601 = vpack.c.b16 %v1531, %v1529
        %v1602 = vpack.c.b16 %v1532, %v1530
        %v1603 = vpack.c.b16 %v1535, %v1533
        %v1604 = vpack.c.b16 %v1536, %v1534
        %v1605 = vpack.c.b16 %v1539, %v1537
        %v1606 = vpack.c.b16 %v1540, %v1538
        %v1607 = vpack.c.b16 %v1543, %v1541
        %v1608 = vpack.c.b16 %v1544, %v1542
        %1673 = vmatprep.subr.bf16.mxu0 %v1546
        %1674 = vmatpush1.bf16.msra.mxu0 %v1545
        %1675 = vmatprep.subr.bf16.mxu0 %v1548
        %1676 = vmatpush1.bf16.msra.mxu0 %v1547
        %1677 = vmatprep.subr.bf16.mxu0 %v1550
        %1678 = vmatpush1.bf16.msra.mxu0 %v1549
        %1679 = vmatprep.subr.bf16.mxu0 %v1552
        %1680 = vmatpush1.bf16.msra.mxu0 %v1551
        %1681 = vmatprep.subr.bf16.mxu0 %v1554
        %1682 = vmatpush1.bf16.msra.mxu0 %v1553
        %1683 = vmatprep.subr.bf16.mxu0 %v1556
        %1684 = vmatpush1.bf16.msra.mxu0 %v1555
        %1685 = vmatprep.subr.bf16.mxu0 %v1558
        %1686 = vmatpush1.bf16.msra.mxu0 %v1557
        %1687 = vmatprep.subr.bf16.mxu0 %v1560
        %1688 = vmatpush1.bf16.msra.mxu0 %v1559
        %1689 = vmatprep.subr.bf16.mxu0 %v1562
        %1690 = vmatpush1.bf16.msra.mxu0 %v1561
        %1691 = vmatprep.subr.bf16.mxu0 %v1564
        %1692 = vmatpush1.bf16.msra.mxu0 %v1563
        %1693 = vmatprep.subr.bf16.mxu0 %v1566
        %1694 = vmatpush1.bf16.msra.mxu0 %v1565
        %1695 = vmatprep.subr.bf16.mxu0 %v1568
        %1696 = vmatpush1.bf16.msra.mxu0 %v1567
        %1697 = vmatprep.subr.bf16.mxu0 %v1570
        %1698 = vmatpush1.bf16.msra.mxu0 %v1569
        %1699 = vmatprep.subr.bf16.mxu0 %v1572
        %1700 = vmatpush1.bf16.msra.mxu0 %v1571
        %1701 = vmatprep.subr.bf16.mxu0 %v1574
        %1702 = vmatpush1.bf16.msra.mxu0 %v1573
        %1703 = vmatprep.subr.bf16.mxu0 %v1576
        %1704 = vmatpush1.bf16.msra.mxu0 %v1575
        %1705 = vmatprep.mubr.bf16.mxu0 %v1286
        %1706 = vmatmul.mubr.bf16.gmra.mrb[0].mxu0 %v1285
        %v1707 = vpop.f32.mrb[0].mxu0
        %v1708 = vadd.f32 0.0, %v1707
        %v1709 = vpop.f32.mrb[0].mxu0
        %v1710 = vadd.f32 0.0, %v1709
        %v1711 = vpop.f32.mrb[0].mxu0
        %v1712 = vadd.f32 0.0, %v1711
        %v1713 = vpop.f32.mrb[0].mxu0
        %v1714 = vadd.f32 0.0, %v1713
        %1715 = vdwg.mxu0
        %1716 = vmatprep.subr.bf16.mxu0 %v1578
        %1717 = vmatpush1.bf16.msra.mxu0 %v1577
        %1718 = vmatprep.subr.bf16.mxu0 %v1580
        %1719 = vmatpush1.bf16.msra.mxu0 %v1579
        %1720 = vmatprep.subr.bf16.mxu0 %v1582
        %1721 = vmatpush1.bf16.msra.mxu0 %v1581
        %1722 = vmatprep.subr.bf16.mxu0 %v1584
        %1723 = vmatpush1.bf16.msra.mxu0 %v1583
        %1724 = vmatprep.subr.bf16.mxu0 %v1586
        %1725 = vmatpush1.bf16.msra.mxu0 %v1585
        %1726 = vmatprep.subr.bf16.mxu0 %v1588
        %1727 = vmatpush1.bf16.msra.mxu0 %v1587
        %1728 = vmatprep.subr.bf16.mxu0 %v1590
        %1729 = vmatpush1.bf16.msra.mxu0 %v1589
        %1730 = vmatprep.subr.bf16.mxu0 %v1592
        %1731 = vmatpush1.bf16.msra.mxu0 %v1591
        %1732 = vmatprep.subr.bf16.mxu0 %v1594
        %1733 = vmatpush1.bf16.msra.mxu0 %v1593
        %1734 = vmatprep.subr.bf16.mxu0 %v1596
        %1735 = vmatpush1.bf16.msra.mxu0 %v1595
        %1736 = vmatprep.subr.bf16.mxu0 %v1598
        %1737 = vmatpush1.bf16.msra.mxu0 %v1597
        %1738 = vmatprep.subr.bf16.mxu0 %v1600
        %1739 = vmatpush1.bf16.msra.mxu0 %v1599
        %1740 = vmatprep.subr.bf16.mxu0 %v1602
        %1741 = vmatpush1.bf16.msra.mxu0 %v1601
        %1742 = vmatprep.subr.bf16.mxu0 %v1604
        %1743 = vmatpush1.bf16.msra.mxu0 %v1603
        %1744 = vmatprep.subr.bf16.mxu0 %v1606
        %1745 = vmatpush1.bf16.msra.mxu0 %v1605
        %1746 = vmatprep.subr.bf16.mxu0 %v1608
        %1747 = vmatpush1.bf16.msra.mxu0 %v1607
        %1748 = vmatprep.mubr.bf16.mxu0 %v1288
        %1749 = vmatmul.mubr.bf16.gmra.mrb[0].mxu0 %v1287
        %v1750 = vpop.f32.mrb[0].mxu0
        %v1751 = vadd.f32 %v1708, %v1750
        %v1752 = vpop.f32.mrb[0].mxu0
        %v1753 = vadd.f32 %v1710, %v1752
        %v1754 = vpop.f32.mrb[0].mxu0
        %v1755 = vadd.f32 %v1712, %v1754
        %v1756 = vpop.f32.mrb[0].mxu0
        %v1757 = vadd.f32 %v1714, %v1756
        %1758 = vdwg.mxu0
        %v1759 = vpack.c.bf16 %v1755, %v1751
        %v1760 = vpack.c.bf16 %v1757, %v1753
        %v1761 = vld [vmem:[%s11] sm:$0x44]
        %v1763 = vunpack.c.l.b16 %v1761
        %v1764 = vunpack.c.h.b16 %v1761
        %v1765 = vpack.c.b16 %v1763, %v1763
        %v1766 = vpack.c.b16 %v1764, %v1764
        %v1768 = vpack.i.b16 %v1765, %v1765
        %v1770 = vlaneseq
        %v1771 = vshrl.u32 %v1770, 7
        %v1772 = vsub.s32 2, %v1771
        %v1773 = vrot.slane %v1768, %v1772
        %v1775 = vpack.i.b16 %v1766, %v1766
        %v1777 = vlaneseq
        %v1778 = vshrl.u32 %v1777, 7
        %v1779 = vsub.s32 2, %v1778
        %v1780 = vrot.slane %v1775, %v1779
        %v1781 = vadd.bf16 %v1759, %v1773
        %v1782 = vadd.bf16 %v1760, %v1780
        %vm1783 = vcmp.gt.bf16.partialorder %v1781, 0
        %vm1784 = vcmp.gt.bf16.partialorder %v1782, 0
        %s1785 = sshll.u32 %s531, 16
        %s1786 = sor.u32 %s531, %s1785
        %v1787 = vstv %s1786
        %v1789 = vmul.bf16 %v1787, %v1781
        %v1790 = vmul.bf16 %v1787, %v1782
        %v1791 = vsel %vm1783, %v1781, %v1789
        %v1792 = vsel %vm1784, %v1782, %v1790
        %v1793 = vld [vmem:[#allocation12] sm:$0xf]
        %v1794 = vld [vmem:[#allocation12 + $0x4] sm:$0xf]
        %v1795 = vld [vmem:[#allocation12 + $0x8] sm:$0xf]
        %v1796 = vld [vmem:[#allocation12 + $0xc] sm:$0xf]
        %v1797 = vld [vmem:[#allocation12 + $0x10] sm:$0xf]
        %v1798 = vld [vmem:[#allocation12 + $0x14] sm:$0xf]
        %v1799 = vld [vmem:[#allocation12 + $0x18] sm:$0xf]
        %v1800 = vld [vmem:[#allocation12 + $0x1c] sm:$0xf]
        %v1801 = vld [vmem:[#allocation12 + $0x20] sm:$0xf]
        %v1802 = vld [vmem:[#allocation12 + $0x24] sm:$0xf]
        %v1803 = vld [vmem:[#allocation12 + $0x28] sm:$0xf]
        %v1804 = vld [vmem:[#allocation12 + $0x2c] sm:$0xf]
        %v1805 = vld [vmem:[#allocation12 + $0x30] sm:$0xf]
        %v1806 = vld [vmem:[#allocation12 + $0x34] sm:$0xf]
        %v1807 = vld [vmem:[#allocation12 + $0x38] sm:$0xf]
        %v1808 = vld [vmem:[#allocation12 + $0x3c] sm:$0xf]
        %v1809 = vld [vmem:[#allocation12 + $0x40] sm:$0xf]
        %v1810 = vld [vmem:[#allocation12 + $0x44] sm:$0xf]
        %v1811 = vld [vmem:[#allocation12 + $0x48] sm:$0xf]
        %v1812 = vld [vmem:[#allocation12 + $0x4c] sm:$0xf]
        %v1813 = vld [vmem:[#allocation12 + $0x50] sm:$0xf]
        %v1814 = vld [vmem:[#allocation12 + $0x54] sm:$0xf]
        %v1815 = vld [vmem:[#allocation12 + $0x58] sm:$0xf]
        %v1816 = vld [vmem:[#allocation12 + $0x5c] sm:$0xf]
        %v1817 = vld [vmem:[#allocation12 + $0x60] sm:$0xf]
        %v1818 = vld [vmem:[#allocation12 + $0x64] sm:$0xf]
        %v1819 = vld [vmem:[#allocation12 + $0x68] sm:$0xf]
        %v1820 = vld [vmem:[#allocation12 + $0x6c] sm:$0xf]
        %v1821 = vld [vmem:[#allocation12 + $0x70] sm:$0xf]
        %v1822 = vld [vmem:[#allocation12 + $0x74] sm:$0xf]
        %v1823 = vld [vmem:[#allocation12 + $0x78] sm:$0xf]
        %v1824 = vld [vmem:[#allocation12 + $0x7c] sm:$0xf]
        %v1857 = vunpack.c.l.b16 %v1793
        %v1858 = vunpack.c.l.b16 %v1794
        %v1859 = vunpack.c.l.b16 %v1795
        %v1860 = vunpack.c.l.b16 %v1796
        %v1861 = vunpack.c.l.b16 %v1797
        %v1862 = vunpack.c.l.b16 %v1798
        %v1863 = vunpack.c.l.b16 %v1799
        %v1864 = vunpack.c.l.b16 %v1800
        %v1865 = vunpack.c.l.b16 %v1801
        %v1866 = vunpack.c.l.b16 %v1802
        %v1867 = vunpack.c.l.b16 %v1803
        %v1868 = vunpack.c.l.b16 %v1804
        %v1869 = vunpack.c.l.b16 %v1805
        %v1870 = vunpack.c.l.b16 %v1806
        %v1871 = vunpack.c.l.b16 %v1807
        %v1872 = vunpack.c.l.b16 %v1808
        %v1873 = vunpack.c.l.b16 %v1809
        %v1874 = vunpack.c.l.b16 %v1810
        %v1875 = vunpack.c.l.b16 %v1811
        %v1876 = vunpack.c.l.b16 %v1812
        %v1877 = vunpack.c.l.b16 %v1813
        %v1878 = vunpack.c.l.b16 %v1814
        %v1879 = vunpack.c.l.b16 %v1815
        %v1880 = vunpack.c.l.b16 %v1816
        %v1881 = vunpack.c.l.b16 %v1817
        %v1882 = vunpack.c.l.b16 %v1818
        %v1883 = vunpack.c.l.b16 %v1819
        %v1884 = vunpack.c.l.b16 %v1820
        %v1885 = vunpack.c.l.b16 %v1821
        %v1886 = vunpack.c.l.b16 %v1822
        %v1887 = vunpack.c.l.b16 %v1823
        %v1888 = vunpack.c.l.b16 %v1824
        %v1889 = vpack.c.b16 %v1858, %v1857
        %v1890 = vpack.c.b16 %v1860, %v1859
        %v1891 = vpack.c.b16 %v1862, %v1861
        %v1892 = vpack.c.b16 %v1864, %v1863
        %v1893 = vpack.c.b16 %v1866, %v1865
        %v1894 = vpack.c.b16 %v1868, %v1867
        %v1895 = vpack.c.b16 %v1870, %v1869
        %v1896 = vpack.c.b16 %v1872, %v1871
        %v1897 = vpack.c.b16 %v1874, %v1873
        %v1898 = vpack.c.b16 %v1876, %v1875
        %v1899 = vpack.c.b16 %v1878, %v1877
        %v1900 = vpack.c.b16 %v1880, %v1879
        %v1901 = vpack.c.b16 %v1882, %v1881
        %v1902 = vpack.c.b16 %v1884, %v1883
        %v1903 = vpack.c.b16 %v1886, %v1885
        %v1904 = vpack.c.b16 %v1888, %v1887
        %1921 = vmatprep.subr.bf16.mxu0 0
        %1922 = vmatpush1.bf16.msra.mxu0 %v1889
        %1923 = vmatprep.subr.bf16.mxu0 0
        %1924 = vmatpush1.bf16.msra.mxu0 %v1890
        %1925 = vmatprep.subr.bf16.mxu0 0
        %1926 = vmatpush1.bf16.msra.mxu0 %v1891
        %1927 = vmatprep.subr.bf16.mxu0 0
        %1928 = vmatpush1.bf16.msra.mxu0 %v1892
        %1929 = vmatprep.subr.bf16.mxu0 0
        %1930 = vmatpush1.bf16.msra.mxu0 %v1893
        %1931 = vmatprep.subr.bf16.mxu0 0
        %1932 = vmatpush1.bf16.msra.mxu0 %v1894
        %1933 = vmatprep.subr.bf16.mxu0 0
        %1934 = vmatpush1.bf16.msra.mxu0 %v1895
        %1935 = vmatprep.subr.bf16.mxu0 0
        %1936 = vmatpush1.bf16.msra.mxu0 %v1896
        %1937 = vmatprep.subr.bf16.mxu0 0
        %1938 = vmatpush1.bf16.msra.mxu0 %v1897
        %1939 = vmatprep.subr.bf16.mxu0 0
        %1940 = vmatpush1.bf16.msra.mxu0 %v1898
        %1941 = vmatprep.subr.bf16.mxu0 0
        %1942 = vmatpush1.bf16.msra.mxu0 %v1899
        %1943 = vmatprep.subr.bf16.mxu0 0
        %1944 = vmatpush1.bf16.msra.mxu0 %v1900
        %1945 = vmatprep.subr.bf16.mxu0 0
        %1946 = vmatpush1.bf16.msra.mxu0 %v1901
        %1947 = vmatprep.subr.bf16.mxu0 0
        %1948 = vmatpush1.bf16.msra.mxu0 %v1902
        %1949 = vmatprep.subr.bf16.mxu0 0
        %1950 = vmatpush1.bf16.msra.mxu0 %v1903
        %1951 = vmatprep.subr.bf16.mxu0 0
        %1952 = vmatpush1.bf16.msra.mxu0 %v1904
        %1953 = vmatprep.mubr.bf16.mxu0 %v1792
        %1954 = vmatmul.mubr.bf16.gmra.mrb[0].mxu0 %v1791
        %v1955 = vpop.f32.mrb[0].mxu0
        %v1956 = vadd.f32 0.0, %v1955
        %v1957 = vpop.f32.mrb[0].mxu0
        %v1958 = vpop.f32.mrb[0].mxu0
        %v1959 = vadd.f32 0.0, %v1958
        %v1960 = vpop.f32.mrb[0].mxu0
        %1961 = vdwg.mxu0
        %v1962 = vpack.c.bf16 %v1959, %v1956
        %v1963 = vld [vmem:[%s11] sm:$0x4]
        %v1965 = vshrl.u32 %v1963, 16
        %v1966 = vpack.i.b16 %v1965, %v1965
        %v1968 = vlaneseq
        %v1969 = vshrl.u32 %v1968, 7
        %v1970 = vsub.s32 2, %v1969
        %v1971 = vrot.slane %v1966, %v1970
        %v1972 = vadd.bf16 %v1962, %v1971
        %vm1973 = vcmp.gt.bf16.partialorder %v1972, 0
        %s1974 = sshll.u32 %s542, 16
        %s1975 = sor.u32 %s542, %s1974
        %v1976 = vstv %s1975
        %v1978 = vmul.bf16 %v1976, %v1972
        %v1979 = vsel %vm1973, %v1972, %v1978
        %v1980 = vld [vmem:[%s9] sm:$0xf]
        %v1981 = vld [vmem:[%s9 + $0x4] sm:$0xf]
        %v1982 = vld [vmem:[%s9 + $0x8] sm:$0xf]
        %v1983 = vld [vmem:[%s9 + $0xc] sm:$0xf]
        %v1984 = vld [vmem:[%s9 + $0x10] sm:$0xf]
        %v1985 = vld [vmem:[%s9 + $0x14] sm:$0xf]
        %v1986 = vld [vmem:[%s9 + $0x18] sm:$0xf]
        %v1987 = vld [vmem:[%s9 + $0x1c] sm:$0xf]
        %v1988 = vld [vmem:[%s9 + $0x20] sm:$0xf]
        %v1989 = vld [vmem:[%s9 + $0x24] sm:$0xf]
        %v1990 = vld [vmem:[%s9 + $0x28] sm:$0xf]
        %v1991 = vld [vmem:[%s9 + $0x2c] sm:$0xf]
        %v1992 = vld [vmem:[%s9 + $0x30] sm:$0xf]
        %v1993 = vld [vmem:[%s9 + $0x34] sm:$0xf]
        %v1994 = vld [vmem:[%s9 + $0x38] sm:$0xf]
        %v1995 = vld [vmem:[%s9 + $0x3c] sm:$0xf]
        %v2012 = vunpack.c.l.b16 %v1980
        %v2013 = vunpack.c.l.b16 %v1981
        %v2014 = vunpack.c.l.b16 %v1982
        %v2015 = vunpack.c.l.b16 %v1983
        %v2016 = vunpack.c.l.b16 %v1984
        %v2017 = vunpack.c.l.b16 %v1985
        %v2018 = vunpack.c.l.b16 %v1986
        %v2019 = vunpack.c.l.b16 %v1987
        %v2020 = vunpack.c.l.b16 %v1988
        %v2021 = vunpack.c.l.b16 %v1989
        %v2022 = vunpack.c.l.b16 %v1990
        %v2023 = vunpack.c.l.b16 %v1991
        %v2024 = vunpack.c.l.b16 %v1992
        %v2025 = vunpack.c.l.b16 %v1993
        %v2026 = vunpack.c.l.b16 %v1994
        %v2027 = vunpack.c.l.b16 %v1995
        %v2028 = vpack.c.b16 %v2013, %v2012
        %v2029 = vpack.c.b16 %v2015, %v2014
        %v2030 = vpack.c.b16 %v2017, %v2016
        %v2031 = vpack.c.b16 %v2019, %v2018
        %v2032 = vpack.c.b16 %v2021, %v2020
        %v2033 = vpack.c.b16 %v2023, %v2022
        %v2034 = vpack.c.b16 %v2025, %v2024
        %v2035 = vpack.c.b16 %v2027, %v2026
        %2044 = vmatprep.subr.bf16.mxu0 0
        %2045 = vmatpush1.bf16.msra.mxu0 %v2028
        %2046 = vmatprep.subr.bf16.mxu0 0
        %2047 = vmatpush1.bf16.msra.mxu0 %v2029
        %2048 = vmatprep.subr.bf16.mxu0 0
        %2049 = vmatpush1.bf16.msra.mxu0 %v2030
        %2050 = vmatprep.subr.bf16.mxu0 0
        %2051 = vmatpush1.bf16.msra.mxu0 %v2031
        %2052 = vmatprep.subr.bf16.mxu0 0
        %2053 = vmatpush1.bf16.msra.mxu0 %v2032
        %2054 = vmatprep.subr.bf16.mxu0 0
        %2055 = vmatpush1.bf16.msra.mxu0 %v2033
        %2056 = vmatprep.subr.bf16.mxu0 0
        %2057 = vmatpush1.bf16.msra.mxu0 %v2034
        %2058 = vmatprep.subr.bf16.mxu0 0
        %2059 = vmatpush1.bf16.msra.mxu0 %v2035
        %2060 = vmatprep.subr.bf16.mxu0 0
        %2061 = vmatpush1.bf16.msra.mxu0 0
        %2062 = vmatprep.subr.bf16.mxu0 0
        %2063 = vmatpush1.bf16.msra.mxu0 0
        %2064 = vmatprep.subr.bf16.mxu0 0
        %2065 = vmatpush1.bf16.msra.mxu0 0
        %2066 = vmatprep.subr.bf16.mxu0 0
        %2067 = vmatpush1.bf16.msra.mxu0 0
        %2068 = vmatprep.subr.bf16.mxu0 0
        %2069 = vmatpush1.bf16.msra.mxu0 0
        %2070 = vmatprep.subr.bf16.mxu0 0
        %2071 = vmatpush1.bf16.msra.mxu0 0
        %2072 = vmatprep.subr.bf16.mxu0 0
        %2073 = vmatpush1.bf16.msra.mxu0 0
        %2074 = vmatprep.subr.bf16.mxu0 0
        %2075 = vmatpush1.bf16.msra.mxu0 0
        %2076 = vmatprep.mubr.bf16.mxu0 0
        %2077 = vmatmul.mubr.bf16.gmra.mrb[0].mxu0 %v1979
        %v2078 = vpop.f32.mrb[0].mxu0
        %v2079 = vadd.f32 0.0, %v2078
        %v2080 = vpop.f32.mrb[0].mxu0
        %v2081 = vpop.f32.mrb[0].mxu0
        %v2082 = vadd.f32 0.0, %v2081
        %v2083 = vpop.f32.mrb[0].mxu0
        %2084 = vdwg.mxu0
        %v2085 = vpack.c.bf16 %v2082, %v2079
        %v2086 = vld [vmem:[%s11] sm:$0x8]
        %v2088 = vpack.i.b16 %v2086, %v2086
        %v2090 = vlaneseq
        %v2091 = vshrl.u32 %v2090, 7
        %v2092 = vsub.s32 3, %v2091
        %v2093 = vrot.slane %v2088, %v2092
        %v2094 = vadd.bf16 %v2085, %v2093
        %vm2095 = vcmp.gt.bf16.partialorder %v2094, 0
        %s2096 = sshll.u32 %s553, 16
        %s2097 = sor.u32 %s553, %s2096
        %v2098 = vstv %s2097
        %v2100 = vmul.bf16 %v2098, %v2094
        %v2101 = vsel %vm2095, %v2094, %v2100
        %v2102 = vld [vmem:[#allocation13] sm:$0xf]
        %v2103 = vld [vmem:[#allocation13 + $0x4] sm:$0xf]
        %v2104 = vld [vmem:[#allocation13 + $0x8] sm:$0xf]
        %v2105 = vld [vmem:[#allocation13 + $0xc] sm:$0xf]
        %v2106 = vld [vmem:[#allocation13 + $0x10] sm:$0xf]
        %v2107 = vld [vmem:[#allocation13 + $0x14] sm:$0xf]
        %v2108 = vld [vmem:[#allocation13 + $0x18] sm:$0xf]
        %v2109 = vld [vmem:[#allocation13 + $0x1c] sm:$0xf]
        %v2118 = vunpack.c.l.b16 %v2102
        %v2119 = vunpack.c.l.b16 %v2103
        %v2120 = vunpack.c.l.b16 %v2104
        %v2121 = vunpack.c.l.b16 %v2105
        %v2122 = vunpack.c.l.b16 %v2106
        %v2123 = vunpack.c.l.b16 %v2107
        %v2124 = vunpack.c.l.b16 %v2108
        %v2125 = vunpack.c.l.b16 %v2109
        %v2126 = vpack.c.b16 %v2119, %v2118
        %v2127 = vpack.c.b16 %v2121, %v2120
        %v2128 = vpack.c.b16 %v2123, %v2122
        %v2129 = vpack.c.b16 %v2125, %v2124
        %vm2134 = vcmask 523264
        %v2136 = vsel %vm2134, %v2101, 0
        %2138 = vmatprep.subr.bf16.mxu0 0
        %2139 = vmatpush1.bf16.msra.mxu0 %v2126
        %2140 = vmatprep.subr.bf16.mxu0 0
        %2141 = vmatpush1.bf16.msra.mxu0 %v2127
        %2142 = vmatprep.subr.bf16.mxu0 0
        %2143 = vmatpush1.bf16.msra.mxu0 %v2128
        %2144 = vmatprep.subr.bf16.mxu0 0
        %2145 = vmatpush1.bf16.msra.mxu0 %v2129
        %2146 = vmatprep.subr.bf16.mxu0 0
        %2147 = vmatpush1.bf16.msra.mxu0 0
        %2148 = vmatprep.subr.bf16.mxu0 0
        %2149 = vmatpush1.bf16.msra.mxu0 0
        %2150 = vmatprep.subr.bf16.mxu0 0
        %2151 = vmatpush1.bf16.msra.mxu0 0
        %2152 = vmatprep.subr.bf16.mxu0 0
        %2153 = vmatpush1.bf16.msra.mxu0 0
        %2154 = vmatprep.subr.bf16.mxu0 0
        %2155 = vmatpush1.bf16.msra.mxu0 0
        %2156 = vmatprep.subr.bf16.mxu0 0
        %2157 = vmatpush1.bf16.msra.mxu0 0
        %2158 = vmatprep.subr.bf16.mxu0 0
        %2159 = vmatpush1.bf16.msra.mxu0 0
        %2160 = vmatprep.subr.bf16.mxu0 0
        %2161 = vmatpush1.bf16.msra.mxu0 0
        %2162 = vmatprep.subr.bf16.mxu0 0
        %2163 = vmatpush1.bf16.msra.mxu0 0
        %2164 = vmatprep.subr.bf16.mxu0 0
        %2165 = vmatpush1.bf16.msra.mxu0 0
        %2166 = vmatprep.subr.bf16.mxu0 0
        %2167 = vmatpush1.bf16.msra.mxu0 0
        %2168 = vmatprep.subr.bf16.mxu0 0
        %2169 = vmatpush1.bf16.msra.mxu0 0
        %2170 = vmatprep.mubr.bf16.mxu0 0
        %2171 = vmatmul.mubr.bf16.gmra.mrb[0].mxu0 %v2136
        %v2172 = vpop.f32.mrb[0].mxu0
        %v2173 = vadd.f32 0.0, %v2172
        %v2174 = vpop.f32.mrb[0].mxu0
        %v2175 = vpop.f32.mrb[0].mxu0
        %v2176 = vadd.f32 0.0, %v2175
        %v2177 = vpop.f32.mrb[0].mxu0
        %2178 = vdwg.mxu0
        %v2179 = vpack.c.bf16 %v2176, %v2173
        %v2180 = vshrl.u32 %v2086, 16
        %v2181 = vpack.i.b16 %v2180, %v2180
        %v2183 = vlaneseq
        %v2184 = vshrl.u32 %v2183, 7
        %v2185 = vsub.s32 3, %v2184
        %v2186 = vrot.slane %v2181, %v2185
        %v2187 = vadd.bf16 %v2179, %v2186
        %v2188 = vunpack.c.l.bf16 %v2187
        %v2189 = vunpack.c.h.bf16 %v2187
        %2190 = vst [vmem:[%s484] sm:$0xff] %v2188
        %2191 = vst [vmem:[%s484 + $0x8] sm:$0xff] %v2189
        %s2192 = sand.u32 %s282, 1
        %s2193 = scalar_lea.sflag [#allocation6], %s2192
        %s2194 = sand.u32 %s282, 1
        %s2195 = smul.addr %s2194, 16
        %s2196 = scalar_lea.vmem [#allocation15], %s2195
        // Predicated region
        $region89: #{tpu_custom_call.1} parent=63 // pred_check
          %p2197 = pneg %p292
        $region90: #{tpu_custom_call.1} parent=63 // pred_check_branch
          %2199 = sbr.rel (%p2197) target = $region92
        $region91: #{tpu_custom_call.1} parent=63 // pred_region
          %s2200 = smul.u32 2, %s38
          %s2202 = ssub.s32 256, 256
          %2203 = vsyncadd %s2193, %s2202
          %s2204 = smul.addr %s2200, 128
          %s2205 = scalar_lea.hbm %s12, %s2204
          %s2206 = sshll.u32 %s2196, 4
          %s2207 = int_to_ptr.vmem [resolvable:$true] %s2206
          %2212 = dma.vmem_to_hbm [thread:$0]  %s2207, 256, %s2205, %s2193, 128, 128, 8
        $region92: #{tpu_custom_call.1} parent=63 // pred_fallthru
          _
      $region64: #{tpu_custom_call.1} parent=5 // pred_fallthru
        _
      %p2213 = scmp.le.s32.totalorder 2, %s33
      // Predicated region
      $region93: #{tpu_custom_call.1} parent=5 // pred_check
        %p2214 = pneg %p2213
      $region94: #{tpu_custom_call.1} parent=5 // pred_check_branch
        %2216 = sbr.rel (%p2214) target = $region96
      $region95: #{tpu_custom_call.1} parent=5 // pred_region
        %s2217 = ssub.s32 %s33, 2
        // Predicated region
        $region97: #{tpu_custom_call.1} parent=95 // pred_check
          %p2218 = pneg %p298
        $region98: #{tpu_custom_call.1} parent=95 // pred_check_branch
          %2220 = sbr.rel (%p2218) target = $region100
        $region99: #{tpu_custom_call.1} parent=95 // pred_region
          %s2221 = sand.u32 %s283, 1
          %s2222 = scalar_lea.sflag [#allocation6], %s2221
          %s2223 = sand.u32 %s283, 1
          %s2224 = smul.addr %s2223, 16
          %s2225 = scalar_lea.vmem [#allocation15], %s2224
          %2226 = dma.done %s2222, 256
        $region100: #{tpu_custom_call.1} parent=95 // pred_fallthru
          _
      $region96: #{tpu_custom_call.1} parent=5 // pred_fallthru
        _
    $region6: #{tpu_custom_call.1} parent=1 // loop_footer
      %s37 = sadd.s32 1, %s33
    $region7: #{tpu_custom_call.1} parent=1 // loop_footer_branch
      %32 = sbr.rel target = $region3
    $region8: #{tpu_custom_call.1} parent=1 // loop_exit
      _
    %2227 = vsyncpa [#allocation5], 1
    %s2228 = scalar_lea.sflag [#allocation5], 1
    %2229 = vsyncpa %s2228, 1
    %2230 = vsyncpa [#allocation8], 1
    %2231 = vsyncpa [#allocation11], 1
    %2232 = vsyncpa [#allocation14], 1
    %2233 = vsyncpa [#allocation6], 1
    %s2234 = scalar_lea.sflag [#allocation6], 1
    %2235 = vsyncpa %s2234, 1

</llo_original>
